<compile_context>
chip_gen: v5e
topology: v5e:2x2
jax: 0.10.0
libtpu: 0.0.40
codegen_flags: <defaults>
</compile_context>

<pallas_src>
import functools

import jax
import jax.numpy as jnp
from jax import lax
from jax.experimental import pallas as pl
from jax.experimental.pallas import tpu as pltpu

EMBEDDING_SIZE = 25
HIDDEN_SIZE = 32
LANES = 128


def progargnet_kernel(ids_ref, gi1_tab_ref, w_hh1_ref, b1_ref, w2_ref, b2_ref,
                      fc_w_ref, fc_b_ref, out_ref, *, seq, b_pad):
    H = HIDDEN_SIZE
    sb = seq * b_pad
    v_pad = gi1_tab_ref.shape[0]

    def mm(a, b):
        return jnp.dot(a, b, preferred_element_type=jnp.float32)

    def sig(x):  # sigmoid via one EUP tanh visit
        return jnp.tanh(x * 0.5) * 0.5 + 0.5

    # ---- In-kernel embedding gather + hoisted layer-1 input projection ------
    # gi1_tab already holds embedding @ W_ih1[g].T (+ all biases outside the
    # reset gate), gates packed along lanes [r|z|n|0].  One one-hot MXU matmul
    # covers all gates and all timesteps.
    ids = ids_ref[...]                                            # (sb, 1) int32
    iota = lax.broadcasted_iota(jnp.int32, (sb, v_pad), 1)
    one_hot = (ids == iota).astype(jnp.float32)                   # (sb, v_pad)
    gi1 = mm(one_hot, gi1_tab_ref[...])                           # (sb, 128) lane-dense

    w_hh1 = w_hh1_ref[...]                                        # (H, 128)   [r|z|n|0]
    w2 = w2_ref[...]                                              # (2H, 128)  block-structured
    # Biases broadcast once (hoisted out of the unrolled loop).
    b1 = jnp.broadcast_to(b1_ref[...], (b_pad, LANES))            # b_hh1_n at lanes 64:96
    b2 = jnp.broadcast_to(b2_ref[...], (b_pad, LANES))            # [r|z|n_ih|n_hh]

    h1 = jnp.zeros((b_pad, H), jnp.float32)
    h2 = jnp.zeros((b_pad, H), jnp.float32)

    # Fully-unrolled recurrence; 2 MXU issues per timestep total.
    for t in range(seq):
        lo = t * b_pad
        gi1_t = gi1[lo:lo + b_pad]                                # (b_pad, 128)

        # Layer 1: single fused recurrent matmul + one bias slab add.
        g1 = mm(h1, w_hh1) + b1                                   # (b_pad, 128)
        r1 = sig(gi1_t[:, 0:H] + g1[:, 0:H])
        z1 = sig(gi1_t[:, H:2 * H] + g1[:, H:2 * H])
        n1 = jnp.tanh(gi1_t[:, 2 * H:3 * H] + r1 * g1[:, 2 * H:3 * H])
        h1 = n1 + z1 * (h1 - n1)

        # Layer 2: single fused matmul over lane-concatenated [h1 | h2].
        h12 = jnp.concatenate([h1, h2], axis=1)                   # (b_pad, 2H)
        g2 = mm(h12, w2) + b2                                     # (b_pad, 128)
        r2 = sig(g2[:, 0:H])
        z2 = sig(g2[:, H:2 * H])
        n2 = jnp.tanh(g2[:, 2 * H:3 * H] + r2 * g2[:, 3 * H:4 * H])
        h2 = n2 + z2 * (h2 - n2)

    relu_out = jnp.maximum(h2, 0.0)                               # ReLU(hid[-1])
    # Lane-dense (b_pad, 128) unmasked store; real columns sliced out in JAX.
    out_ref[...] = mm(relu_out, fc_w_ref[...]) + fc_b_ref[...]


def init_params(key, vocab_size, num_classes):
    """Raw PyTorch-layout parameters (same layout as nn.GRU / nn.Linear)."""
    ks = jax.random.split(key, 12)
    H, E = HIDDEN_SIZE, EMBEDDING_SIZE
    s = 1.0 / jnp.sqrt(jnp.float32(H))

    def u(k, shape):
        return jax.random.uniform(k, shape, jnp.float32, -s, s)

    return {
        "embedding": jax.random.normal(ks[0], (vocab_size, E), jnp.float32),
        # layer 0: input E -> hidden H     (gate order r, z, n)
        "w_ih1": u(ks[1], (3 * H, E)),
        "w_hh1": u(ks[2], (3 * H, H)),
        "b_ih1": u(ks[3], (3 * H,)),
        "b_hh1": u(ks[4], (3 * H,)),
        # layer 1: input H -> hidden H
        "w_ih2": u(ks[5], (3 * H, H)),
        "w_hh2": u(ks[6], (3 * H, H)),
        "b_ih2": u(ks[7], (3 * H,)),
        "b_hh2": u(ks[8], (3 * H,)),
        # fc2
        "fc_w": u(ks[9], (num_classes, H)),
        "fc_b": u(ks[10], (num_classes,)),
    }


def pack_params(params, num_classes):
    """One-time packing: gate fusion along lanes, transposes, bias folding, padding."""
    H = HIDDEN_SIZE
    emb = params["embedding"].astype(jnp.float32)
    vocab = emb.shape[0]
    v_pad = ((vocab + 7) // 8) * 8
    c_pad = ((num_classes + 127) // 128) * 128

    def gate(w, i):  # rows [iH:(i+1)H] of a (3H, K) weight, transposed -> (K, H)
        return w[i * H:(i + 1) * H].astype(jnp.float32).T

    b_ih1 = params["b_ih1"].astype(jnp.float32)
    b_hh1 = params["b_hh1"].astype(jnp.float32)
    b_ih2 = params["b_ih2"].astype(jnp.float32)
    b_hh2 = params["b_hh2"].astype(jnp.float32)

    # Layer-1 input projection folded into the embedding table, gates along lanes
    # [r | z | n | 0] -> (v_pad, 128).  (Valid because dropout is identity in eval.)
    tab_r = emb @ gate(params["w_ih1"], 0) + b_ih1[0:H] + b_hh1[0:H]
    tab_z = emb @ gate(params["w_ih1"], 1) + b_ih1[H:2 * H] + b_hh1[H:2 * H]
    tab_n = emb @ gate(params["w_ih1"], 2) + b_ih1[2 * H:3 * H]
    gi1_tab = jnp.concatenate(
        [tab_r, tab_z, tab_n, jnp.zeros((vocab, LANES - 3 * H), jnp.float32)], axis=1)
    gi1_tab = jnp.pad(gi1_tab, ((0, v_pad - vocab), (0, 0)))          # (v_pad, 128)

    # Layer-1 recurrent weights fused along lanes [r | z | n | 0] -> (H, 128).
    w_hh1_pk = jnp.concatenate(
        [gate(params["w_hh1"], 0), gate(params["w_hh1"], 1),
         gate(params["w_hh1"], 2), jnp.zeros((H, LANES - 3 * H), jnp.float32)], axis=1)
    # Layer-1 bias slab: only b_hh1_n (inside the reset gate) remains, at lanes 64:96.
    b1_slab = jnp.zeros((1, LANES), jnp.float32).at[0, 2 * H:3 * H].set(b_hh1[2 * H:3 * H])

    # Layer-2 block-structured fused weight (2H, 128):
    #   rows 0:H multiply h1, rows H:2H multiply h2;
    #   cols 0:32=[ih_r;hh_r], 32:64=[ih_z;hh_z], 64:96=[ih_n;0], 96:128=[0;hh_n].
    zeros_hh = jnp.zeros((H, H), jnp.float32)
    w2_top = jnp.concatenate([gate(params["w_ih2"], 0), gate(params["w_ih2"], 1),
                              gate(params["w_ih2"], 2), zeros_hh], axis=1)
    w2_bot = jnp.concatenate([gate(params["w_hh2"], 0), gate(params["w_hh2"], 1),
                              zeros_hh, gate(params["w_hh2"], 2)], axis=1)
    w2_pk = jnp.concatenate([w2_top, w2_bot], axis=0)                 # (2H, 128)
    # Layer-2 bias slab (1, 128): [b_r fused | b_z fused | b_ih2_n | b_hh2_n].
    b2_slab = jnp.concatenate([
        b_ih2[0:H] + b_hh2[0:H],
        b_ih2[H:2 * H] + b_hh2[H:2 * H],
        b_ih2[2 * H:3 * H],
        b_hh2[2 * H:3 * H],
    ])[None, :]                                                       # (1, 128)

    fc_w_t = jnp.zeros((H, c_pad), jnp.float32).at[:, :num_classes].set(
        params["fc_w"].astype(jnp.float32).T)
    fc_b = jnp.zeros((1, c_pad), jnp.float32).at[0, :num_classes].set(
        params["fc_b"].astype(jnp.float32))

    return {
        "gi1_tab": gi1_tab, "w_hh1_pk": w_hh1_pk, "b1_slab": b1_slab,
        "w2_pk": w2_pk, "b2_slab": b2_slab, "fc_w_t": fc_w_t, "fc_b": fc_b,
    }


@functools.partial(jax.jit, static_argnums=2)
def progargnet_forward(inputs, packed, num_classes):
    """inputs: (batch, seq) int32 token ids -> (batch, num_classes) f32."""
    batch, seq = inputs.shape
    b_pad = ((batch + 7) // 8) * 8

    ids_t = inputs.astype(jnp.int32).T                                # (seq, batch)
    ids_t = jnp.pad(ids_t, ((0, 0), (0, b_pad - batch)))              # (seq, b_pad)
    ids_flat = ids_t.reshape(seq * b_pad, 1)                          # (seq*b_pad, 1)

    c_pad = packed["fc_w_t"].shape[1]
    vmem = pl.BlockSpec(memory_space=pltpu.MemorySpace.VMEM)
    kernel = functools.partial(progargnet_kernel, seq=seq, b_pad=b_pad)

    out = pl.pallas_call(
        kernel,
        out_shape=jax.ShapeDtypeStruct((b_pad, c_pad), jnp.float32),
        in_specs=[vmem] * 8,
        out_specs=vmem,
    )(ids_flat, packed["gi1_tab"], packed["w_hh1_pk"], packed["b1_slab"],
      packed["w2_pk"], packed["b2_slab"], packed["fc_w_t"], packed["fc_b"])

    return out[:batch, :num_classes]


def progargnet_reference(inputs, params):
    """Pure-JAX reference mirroring PyTorch GRU semantics (eval mode)."""
    inputs_t = inputs.T
    emb = jnp.take(params["embedding"], inputs_t, axis=0).astype(jnp.float32)
    batch = inputs.shape[0]
    h1 = jnp.zeros((batch, HIDDEN_SIZE), jnp.float32)
    h2 = jnp.zeros((batch, HIDDEN_SIZE), jnp.float32)

    def cell(x, h, w_ih, w_hh, b_ih, b_hh):
        H = HIDDEN_SIZE
        gi = x @ w_ih.T + b_ih
        gh = h @ w_hh.T + b_hh
        r = jax.nn.sigmoid(gi[:, :H] + gh[:, :H])
        z = jax.nn.sigmoid(gi[:, H:2 * H] + gh[:, H:2 * H])
        n = jnp.tanh(gi[:, 2 * H:] + r * gh[:, 2 * H:])
        return (1.0 - z) * n + z * h

    for t in range(emb.shape[0]):
        h1 = cell(emb[t], h1, params["w_ih1"], params["w_hh1"],
                  params["b_ih1"], params["b_hh1"])
        h2 = cell(h1, h2, params["w_ih2"], params["w_hh2"],
                  params["b_ih2"], params["b_hh2"])
    relu_out = jnp.maximum(h2, 0.0)
    return relu_out @ params["fc_w"].T + params["fc_b"]


if __name__ == "__main__":
    key = jax.random.PRNGKey(0)
    k_param, k_inp = jax.random.split(key)

    vocab_size = 50
    num_classes = 10
    batch, seq = 2, 8

    params = init_params(k_param, vocab_size, num_classes)
    packed = pack_params(params, num_classes)       # one-time weight packing
    inputs = jax.random.randint(k_inp, (batch, seq), 0, vocab_size, jnp.int32)

    out = progargnet_forward(inputs, packed, num_classes)
    out = jax.block_until_ready(out)

    ref = progargnet_reference(inputs, params)
    assert out.shape == (batch, num_classes)
    assert jnp.allclose(out, ref, rtol=2e-4, atol=2e-4), (
        f"mismatch: max abs err {jnp.max(jnp.abs(out - ref))}")

    print("KERNEL_OK")
</pallas_src>

<mosaic_0001>
module attributes {stable_mosaic.version = 11 : i64} {
  func.func @progargnet_kernel(%arg0: memref<64x1xi32, #tpu.memory_space<vmem>>, %arg1: memref<56x128xf32, #tpu.memory_space<vmem>>, %arg2: memref<32x128xf32, #tpu.memory_space<vmem>>, %arg3: memref<1x128xf32, #tpu.memory_space<vmem>>, %arg4: memref<64x128xf32, #tpu.memory_space<vmem>>, %arg5: memref<1x128xf32, #tpu.memory_space<vmem>>, %arg6: memref<32x128xf32, #tpu.memory_space<vmem>>, %arg7: memref<1x128xf32, #tpu.memory_space<vmem>>, %arg8: memref<8x128xf32, #tpu.memory_space<vmem>>) attributes {dimension_semantics = [], scalar_prefetch = 0 : i64, scratch_operands = 0 : i64, tpu.core_type = #tpu.core_type<tc>} {
    %c0 = arith.constant 0 : index
    %c0_0 = arith.constant 0 : index
    %0 = vector.load %arg0[%c0, %c0_0] : memref<64x1xi32, #tpu.memory_space<vmem>>, vector<64x1xi32>
    %1 = tpu.iota {dimensions = array<i32: 1>} : vector<64x56xi32>
    %2 = vector.broadcast %0 : vector<64x1xi32> to vector<64x56xi32>
    %3 = arith.cmpi eq, %2, %1 : vector<64x56xi32>
    %4 = arith.extui %3 : vector<64x56xi1> to vector<64x56xi32>
    %5 = arith.sitofp %4 : vector<64x56xi32> to vector<64x56xf32>
    %c0_1 = arith.constant 0 : index
    %c0_2 = arith.constant 0 : index
    %6 = vector.load %arg1[%c0_1, %c0_2] : memref<56x128xf32, #tpu.memory_space<vmem>>, vector<56x128xf32>
    %cst = arith.constant dense<0.000000e+00> : vector<64x128xf32>
    %7 = tpu.matmul %5, %6, %cst {dimension_numbers = #tpu.dot_dimension_numbers<[1], [0], [0], [1], [0, 0, 1, 1], [], []>} : vector<64x56xf32>, vector<56x128xf32>, vector<64x128xf32> -> vector<64x128xf32>
    %c0_3 = arith.constant 0 : index
    %c0_4 = arith.constant 0 : index
    %8 = vector.load %arg2[%c0_3, %c0_4] : memref<32x128xf32, #tpu.memory_space<vmem>>, vector<32x128xf32>
    %c0_5 = arith.constant 0 : index
    %c0_6 = arith.constant 0 : index
    %9 = vector.load %arg4[%c0_5, %c0_6] : memref<64x128xf32, #tpu.memory_space<vmem>>, vector<64x128xf32>
    %c0_7 = arith.constant 0 : index
    %c0_8 = arith.constant 0 : index
    %10 = vector.load %arg3[%c0_7, %c0_8] : memref<1x128xf32, #tpu.memory_space<vmem>>, vector<1x128xf32>
    %11 = vector.shape_cast %10 : vector<1x128xf32> to vector<1x128xf32>
    %12 = vector.broadcast %11 : vector<1x128xf32> to vector<8x128xf32>
    %c0_9 = arith.constant 0 : index
    %c0_10 = arith.constant 0 : index
    %13 = vector.load %arg5[%c0_9, %c0_10] : memref<1x128xf32, #tpu.memory_space<vmem>>, vector<1x128xf32>
    %14 = vector.shape_cast %13 : vector<1x128xf32> to vector<1x128xf32>
    %15 = vector.broadcast %14 : vector<1x128xf32> to vector<8x128xf32>
    %cst_11 = arith.constant 0.000000e+00 : f32
    %16 = vector.broadcast %cst_11 : f32 to vector<8x32xf32>
    %cst_12 = arith.constant 0.000000e+00 : f32
    %17 = vector.broadcast %cst_12 : f32 to vector<8x32xf32>
    %18 = vector.extract_strided_slice %7 {offsets = [0, 0], sizes = [8, 128], strides = [1, 1]} : vector<64x128xf32> to vector<8x128xf32>
    %cst_13 = arith.constant dense<0.000000e+00> : vector<8x128xf32>
    %19 = tpu.matmul %16, %8, %cst_13 {dimension_numbers = #tpu.dot_dimension_numbers<[1], [0], [0], [1], [0, 0, 1, 1], [], []>} : vector<8x32xf32>, vector<32x128xf32>, vector<8x128xf32> -> vector<8x128xf32>
    %20 = arith.addf %19, %12 : vector<8x128xf32>
    %21 = vector.extract_strided_slice %18 {offsets = [0, 0], sizes = [8, 32], strides = [1, 1]} : vector<8x128xf32> to vector<8x32xf32>
    %22 = vector.extract_strided_slice %20 {offsets = [0, 0], sizes = [8, 32], strides = [1, 1]} : vector<8x128xf32> to vector<8x32xf32>
    %23 = arith.addf %21, %22 : vector<8x32xf32>
    %cst_14 = arith.constant 5.000000e-01 : f32
    %24 = vector.broadcast %cst_14 : f32 to vector<8x32xf32>
    %25 = arith.mulf %23, %24 : vector<8x32xf32>
    %26 = math.tanh %25 : vector<8x32xf32>
    %cst_15 = arith.constant 5.000000e-01 : f32
    %27 = vector.broadcast %cst_15 : f32 to vector<8x32xf32>
    %28 = arith.mulf %26, %27 : vector<8x32xf32>
    %cst_16 = arith.constant 5.000000e-01 : f32
    %29 = vector.broadcast %cst_16 : f32 to vector<8x32xf32>
    %30 = arith.addf %28, %29 : vector<8x32xf32>
    %31 = vector.extract_strided_slice %18 {offsets = [0, 32], sizes = [8, 32], strides = [1, 1]} : vector<8x128xf32> to vector<8x32xf32>
    %32 = vector.extract_strided_slice %20 {offsets = [0, 32], sizes = [8, 32], strides = [1, 1]} : vector<8x128xf32> to vector<8x32xf32>
    %33 = arith.addf %31, %32 : vector<8x32xf32>
    %cst_17 = arith.constant 5.000000e-01 : f32
    %34 = vector.broadcast %cst_17 : f32 to vector<8x32xf32>
    %35 = arith.mulf %33, %34 : vector<8x32xf32>
    %36 = math.tanh %35 : vector<8x32xf32>
    %cst_18 = arith.constant 5.000000e-01 : f32
    %37 = vector.broadcast %cst_18 : f32 to vector<8x32xf32>
    %38 = arith.mulf %36, %37 : vector<8x32xf32>
    %cst_19 = arith.constant 5.000000e-01 : f32
    %39 = vector.broadcast %cst_19 : f32 to vector<8x32xf32>
    %40 = arith.addf %38, %39 : vector<8x32xf32>
    %41 = vector.extract_strided_slice %18 {offsets = [0, 64], sizes = [8, 32], strides = [1, 1]} : vector<8x128xf32> to vector<8x32xf32>
    %42 = vector.extract_strided_slice %20 {offsets = [0, 64], sizes = [8, 32], strides = [1, 1]} : vector<8x128xf32> to vector<8x32xf32>
    %43 = arith.mulf %30, %42 : vector<8x32xf32>
    %44 = arith.addf %41, %43 : vector<8x32xf32>
    %45 = math.tanh %44 : vector<8x32xf32>
    %46 = arith.subf %16, %45 : vector<8x32xf32>
    %47 = arith.mulf %40, %46 : vector<8x32xf32>
    %48 = arith.addf %45, %47 : vector<8x32xf32>
    %49 = tpu.concatenate %48, %17 in 1 : vector<8x32xf32>, vector<8x32xf32> -> vector<8x64xf32>
    %cst_20 = arith.constant dense<0.000000e+00> : vector<8x128xf32>
    %50 = tpu.matmul %49, %9, %cst_20 {dimension_numbers = #tpu.dot_dimension_numbers<[1], [0], [0], [1], [0, 0, 1, 1], [], []>} : vector<8x64xf32>, vector<64x128xf32>, vector<8x128xf32> -> vector<8x128xf32>
    %51 = arith.addf %50, %15 : vector<8x128xf32>
    %52 = vector.extract_strided_slice %51 {offsets = [0, 0], sizes = [8, 32], strides = [1, 1]} : vector<8x128xf32> to vector<8x32xf32>
    %cst_21 = arith.constant 5.000000e-01 : f32
    %53 = vector.broadcast %cst_21 : f32 to vector<8x32xf32>
    %54 = arith.mulf %52, %53 : vector<8x32xf32>
    %55 = math.tanh %54 : vector<8x32xf32>
    %cst_22 = arith.constant 5.000000e-01 : f32
    %56 = vector.broadcast %cst_22 : f32 to vector<8x32xf32>
    %57 = arith.mulf %55, %56 : vector<8x32xf32>
    %cst_23 = arith.constant 5.000000e-01 : f32
    %58 = vector.broadcast %cst_23 : f32 to vector<8x32xf32>
    %59 = arith.addf %57, %58 : vector<8x32xf32>
    %60 = vector.extract_strided_slice %51 {offsets = [0, 32], sizes = [8, 32], strides = [1, 1]} : vector<8x128xf32> to vector<8x32xf32>
    %cst_24 = arith.constant 5.000000e-01 : f32
    %61 = vector.broadcast %cst_24 : f32 to vector<8x32xf32>
    %62 = arith.mulf %60, %61 : vector<8x32xf32>
    %63 = math.tanh %62 : vector<8x32xf32>
    %cst_25 = arith.constant 5.000000e-01 : f32
    %64 = vector.broadcast %cst_25 : f32 to vector<8x32xf32>
    %65 = arith.mulf %63, %64 : vector<8x32xf32>
    %cst_26 = arith.constant 5.000000e-01 : f32
    %66 = vector.broadcast %cst_26 : f32 to vector<8x32xf32>
    %67 = arith.addf %65, %66 : vector<8x32xf32>
    %68 = vector.extract_strided_slice %51 {offsets = [0, 64], sizes = [8, 32], strides = [1, 1]} : vector<8x128xf32> to vector<8x32xf32>
    %69 = vector.extract_strided_slice %51 {offsets = [0, 96], sizes = [8, 32], strides = [1, 1]} : vector<8x128xf32> to vector<8x32xf32>
    %70 = arith.mulf %59, %69 : vector<8x32xf32>
    %71 = arith.addf %68, %70 : vector<8x32xf32>
    %72 = math.tanh %71 : vector<8x32xf32>
    %73 = arith.subf %17, %72 : vector<8x32xf32>
    %74 = arith.mulf %67, %73 : vector<8x32xf32>
    %75 = arith.addf %72, %74 : vector<8x32xf32>
    %76 = vector.extract_strided_slice %7 {offsets = [8, 0], sizes = [8, 128], strides = [1, 1]} : vector<64x128xf32> to vector<8x128xf32>
    %cst_27 = arith.constant dense<0.000000e+00> : vector<8x128xf32>
    %77 = tpu.matmul %48, %8, %cst_27 {dimension_numbers = #tpu.dot_dimension_numbers<[1], [0], [0], [1], [0, 0, 1, 1], [], []>} : vector<8x32xf32>, vector<32x128xf32>, vector<8x128xf32> -> vector<8x128xf32>
    %78 = arith.addf %77, %12 : vector<8x128xf32>
    %79 = vector.extract_strided_slice %76 {offsets = [0, 0], sizes = [8, 32], strides = [1, 1]} : vector<8x128xf32> to vector<8x32xf32>
    %80 = vector.extract_strided_slice %78 {offsets = [0, 0], sizes = [8, 32], strides = [1, 1]} : vector<8x128xf32> to vector<8x32xf32>
    %81 = arith.addf %79, %80 : vector<8x32xf32>
    %cst_28 = arith.constant 5.000000e-01 : f32
    %82 = vector.broadcast %cst_28 : f32 to vector<8x32xf32>
    %83 = arith.mulf %81, %82 : vector<8x32xf32>
    %84 = math.tanh %83 : vector<8x32xf32>
    %cst_29 = arith.constant 5.000000e-01 : f32
    %85 = vector.broadcast %cst_29 : f32 to vector<8x32xf32>
    %86 = arith.mulf %84, %85 : vector<8x32xf32>
    %cst_30 = arith.constant 5.000000e-01 : f32
    %87 = vector.broadcast %cst_30 : f32 to vector<8x32xf32>
    %88 = arith.addf %86, %87 : vector<8x32xf32>
    %89 = vector.extract_strided_slice %76 {offsets = [0, 32], sizes = [8, 32], strides = [1, 1]} : vector<8x128xf32> to vector<8x32xf32>
    %90 = vector.extract_strided_slice %78 {offsets = [0, 32], sizes = [8, 32], strides = [1, 1]} : vector<8x128xf32> to vector<8x32xf32>
    %91 = arith.addf %89, %90 : vector<8x32xf32>
    %cst_31 = arith.constant 5.000000e-01 : f32
    %92 = vector.broadcast %cst_31 : f32 to vector<8x32xf32>
    %93 = arith.mulf %91, %92 : vector<8x32xf32>
    %94 = math.tanh %93 : vector<8x32xf32>
    %cst_32 = arith.constant 5.000000e-01 : f32
    %95 = vector.broadcast %cst_32 : f32 to vector<8x32xf32>
    %96 = arith.mulf %94, %95 : vector<8x32xf32>
    %cst_33 = arith.constant 5.000000e-01 : f32
    %97 = vector.broadcast %cst_33 : f32 to vector<8x32xf32>
    %98 = arith.addf %96, %97 : vector<8x32xf32>
    %99 = vector.extract_strided_slice %76 {offsets = [0, 64], sizes = [8, 32], strides = [1, 1]} : vector<8x128xf32> to vector<8x32xf32>
    %100 = vector.extract_strided_slice %78 {offsets = [0, 64], sizes = [8, 32], strides = [1, 1]} : vector<8x128xf32> to vector<8x32xf32>
    %101 = arith.mulf %88, %100 : vector<8x32xf32>
    %102 = arith.addf %99, %101 : vector<8x32xf32>
    %103 = math.tanh %102 : vector<8x32xf32>
    %104 = arith.subf %48, %103 : vector<8x32xf32>
    %105 = arith.mulf %98, %104 : vector<8x32xf32>
    %106 = arith.addf %103, %105 : vector<8x32xf32>
    %107 = tpu.concatenate %106, %75 in 1 : vector<8x32xf32>, vector<8x32xf32> -> vector<8x64xf32>
    %cst_34 = arith.constant dense<0.000000e+00> : vector<8x128xf32>
    %108 = tpu.matmul %107, %9, %cst_34 {dimension_numbers = #tpu.dot_dimension_numbers<[1], [0], [0], [1], [0, 0, 1, 1], [], []>} : vector<8x64xf32>, vector<64x128xf32>, vector<8x128xf32> -> vector<8x128xf32>
    %109 = arith.addf %108, %15 : vector<8x128xf32>
    %110 = vector.extract_strided_slice %109 {offsets = [0, 0], sizes = [8, 32], strides = [1, 1]} : vector<8x128xf32> to vector<8x32xf32>
    %cst_35 = arith.constant 5.000000e-01 : f32
    %111 = vector.broadcast %cst_35 : f32 to vector<8x32xf32>
    %112 = arith.mulf %110, %111 : vector<8x32xf32>
    %113 = math.tanh %112 : vector<8x32xf32>
    %cst_36 = arith.constant 5.000000e-01 : f32
    %114 = vector.broadcast %cst_36 : f32 to vector<8x32xf32>
    %115 = arith.mulf %113, %114 : vector<8x32xf32>
    %cst_37 = arith.constant 5.000000e-01 : f32
    %116 = vector.broadcast %cst_37 : f32 to vector<8x32xf32>
    %117 = arith.addf %115, %116 : vector<8x32xf32>
    %118 = vector.extract_strided_slice %109 {offsets = [0, 32], sizes = [8, 32], strides = [1, 1]} : vector<8x128xf32> to vector<8x32xf32>
    %cst_38 = arith.constant 5.000000e-01 : f32
    %119 = vector.broadcast %cst_38 : f32 to vector<8x32xf32>
    %120 = arith.mulf %118, %119 : vector<8x32xf32>
    %121 = math.tanh %120 : vector<8x32xf32>
    %cst_39 = arith.constant 5.000000e-01 : f32
    %122 = vector.broadcast %cst_39 : f32 to vector<8x32xf32>
    %123 = arith.mulf %121, %122 : vector<8x32xf32>
    %cst_40 = arith.constant 5.000000e-01 : f32
    %124 = vector.broadcast %cst_40 : f32 to vector<8x32xf32>
    %125 = arith.addf %123, %124 : vector<8x32xf32>
    %126 = vector.extract_strided_slice %109 {offsets = [0, 64], sizes = [8, 32], strides = [1, 1]} : vector<8x128xf32> to vector<8x32xf32>
    %127 = vector.extract_strided_slice %109 {offsets = [0, 96], sizes = [8, 32], strides = [1, 1]} : vector<8x128xf32> to vector<8x32xf32>
    %128 = arith.mulf %117, %127 : vector<8x32xf32>
    %129 = arith.addf %126, %128 : vector<8x32xf32>
    %130 = math.tanh %129 : vector<8x32xf32>
    %131 = arith.subf %75, %130 : vector<8x32xf32>
    %132 = arith.mulf %125, %131 : vector<8x32xf32>
    %133 = arith.addf %130, %132 : vector<8x32xf32>
    %134 = vector.extract_strided_slice %7 {offsets = [16, 0], sizes = [8, 128], strides = [1, 1]} : vector<64x128xf32> to vector<8x128xf32>
    %cst_41 = arith.constant dense<0.000000e+00> : vector<8x128xf32>
    %135 = tpu.matmul %106, %8, %cst_41 {dimension_numbers = #tpu.dot_dimension_numbers<[1], [0], [0], [1], [0, 0, 1, 1], [], []>} : vector<8x32xf32>, vector<32x128xf32>, vector<8x128xf32> -> vector<8x128xf32>
    %136 = arith.addf %135, %12 : vector<8x128xf32>
    %137 = vector.extract_strided_slice %134 {offsets = [0, 0], sizes = [8, 32], strides = [1, 1]} : vector<8x128xf32> to vector<8x32xf32>
    %138 = vector.extract_strided_slice %136 {offsets = [0, 0], sizes = [8, 32], strides = [1, 1]} : vector<8x128xf32> to vector<8x32xf32>
    %139 = arith.addf %137, %138 : vector<8x32xf32>
    %cst_42 = arith.constant 5.000000e-01 : f32
    %140 = vector.broadcast %cst_42 : f32 to vector<8x32xf32>
    %141 = arith.mulf %139, %140 : vector<8x32xf32>
    %142 = math.tanh %141 : vector<8x32xf32>
    %cst_43 = arith.constant 5.000000e-01 : f32
    %143 = vector.broadcast %cst_43 : f32 to vector<8x32xf32>
    %144 = arith.mulf %142, %143 : vector<8x32xf32>
    %cst_44 = arith.constant 5.000000e-01 : f32
    %145 = vector.broadcast %cst_44 : f32 to vector<8x32xf32>
    %146 = arith.addf %144, %145 : vector<8x32xf32>
    %147 = vector.extract_strided_slice %134 {offsets = [0, 32], sizes = [8, 32], strides = [1, 1]} : vector<8x128xf32> to vector<8x32xf32>
    %148 = vector.extract_strided_slice %136 {offsets = [0, 32], sizes = [8, 32], strides = [1, 1]} : vector<8x128xf32> to vector<8x32xf32>
    %149 = arith.addf %147, %148 : vector<8x32xf32>
    %cst_45 = arith.constant 5.000000e-01 : f32
    %150 = vector.broadcast %cst_45 : f32 to vector<8x32xf32>
    %151 = arith.mulf %149, %150 : vector<8x32xf32>
    %152 = math.tanh %151 : vector<8x32xf32>
    %cst_46 = arith.constant 5.000000e-01 : f32
    %153 = vector.broadcast %cst_46 : f32 to vector<8x32xf32>
    %154 = arith.mulf %152, %153 : vector<8x32xf32>
    %cst_47 = arith.constant 5.000000e-01 : f32
    %155 = vector.broadcast %cst_47 : f32 to vector<8x32xf32>
    %156 = arith.addf %154, %155 : vector<8x32xf32>
    %157 = vector.extract_strided_slice %134 {offsets = [0, 64], sizes = [8, 32], strides = [1, 1]} : vector<8x128xf32> to vector<8x32xf32>
    %158 = vector.extract_strided_slice %136 {offsets = [0, 64], sizes = [8, 32], strides = [1, 1]} : vector<8x128xf32> to vector<8x32xf32>
    %159 = arith.mulf %146, %158 : vector<8x32xf32>
    %160 = arith.addf %157, %159 : vector<8x32xf32>
    %161 = math.tanh %160 : vector<8x32xf32>
    %162 = arith.subf %106, %161 : vector<8x32xf32>
    %163 = arith.mulf %156, %162 : vector<8x32xf32>
    %164 = arith.addf %161, %163 : vector<8x32xf32>
    %165 = tpu.concatenate %164, %133 in 1 : vector<8x32xf32>, vector<8x32xf32> -> vector<8x64xf32>
    %cst_48 = arith.constant dense<0.000000e+00> : vector<8x128xf32>
    %166 = tpu.matmul %165, %9, %cst_48 {dimension_numbers = #tpu.dot_dimension_numbers<[1], [0], [0], [1], [0, 0, 1, 1], [], []>} : vector<8x64xf32>, vector<64x128xf32>, vector<8x128xf32> -> vector<8x128xf32>
    %167 = arith.addf %166, %15 : vector<8x128xf32>
    %168 = vector.extract_strided_slice %167 {offsets = [0, 0], sizes = [8, 32], strides = [1, 1]} : vector<8x128xf32> to vector<8x32xf32>
    %cst_49 = arith.constant 5.000000e-01 : f32
    %169 = vector.broadcast %cst_49 : f32 to vector<8x32xf32>
    %170 = arith.mulf %168, %169 : vector<8x32xf32>
    %171 = math.tanh %170 : vector<8x32xf32>
    %cst_50 = arith.constant 5.000000e-01 : f32
    %172 = vector.broadcast %cst_50 : f32 to vector<8x32xf32>
    %173 = arith.mulf %171, %172 : vector<8x32xf32>
    %cst_51 = arith.constant 5.000000e-01 : f32
    %174 = vector.broadcast %cst_51 : f32 to vector<8x32xf32>
    %175 = arith.addf %173, %174 : vector<8x32xf32>
    %176 = vector.extract_strided_slice %167 {offsets = [0, 32], sizes = [8, 32], strides = [1, 1]} : vector<8x128xf32> to vector<8x32xf32>
    %cst_52 = arith.constant 5.000000e-01 : f32
    %177 = vector.broadcast %cst_52 : f32 to vector<8x32xf32>
    %178 = arith.mulf %176, %177 : vector<8x32xf32>
    %179 = math.tanh %178 : vector<8x32xf32>
    %cst_53 = arith.constant 5.000000e-01 : f32
    %180 = vector.broadcast %cst_53 : f32 to vector<8x32xf32>
    %181 = arith.mulf %179, %180 : vector<8x32xf32>
    %cst_54 = arith.constant 5.000000e-01 : f32
    %182 = vector.broadcast %cst_54 : f32 to vector<8x32xf32>
    %183 = arith.addf %181, %182 : vector<8x32xf32>
    %184 = vector.extract_strided_slice %167 {offsets = [0, 64], sizes = [8, 32], strides = [1, 1]} : vector<8x128xf32> to vector<8x32xf32>
    %185 = vector.extract_strided_slice %167 {offsets = [0, 96], sizes = [8, 32], strides = [1, 1]} : vector<8x128xf32> to vector<8x32xf32>
    %186 = arith.mulf %175, %185 : vector<8x32xf32>
    %187 = arith.addf %184, %186 : vector<8x32xf32>
    %188 = math.tanh %187 : vector<8x32xf32>
    %189 = arith.subf %133, %188 : vector<8x32xf32>
    %190 = arith.mulf %183, %189 : vector<8x32xf32>
    %191 = arith.addf %188, %190 : vector<8x32xf32>
    %192 = vector.extract_strided_slice %7 {offsets = [24, 0], sizes = [8, 128], strides = [1, 1]} : vector<64x128xf32> to vector<8x128xf32>
    %cst_55 = arith.constant dense<0.000000e+00> : vector<8x128xf32>
    %193 = tpu.matmul %164, %8, %cst_55 {dimension_numbers = #tpu.dot_dimension_numbers<[1], [0], [0], [1], [0, 0, 1, 1], [], []>} : vector<8x32xf32>, vector<32x128xf32>, vector<8x128xf32> -> vector<8x128xf32>
    %194 = arith.addf %193, %12 : vector<8x128xf32>
    %195 = vector.extract_strided_slice %192 {offsets = [0, 0], sizes = [8, 32], strides = [1, 1]} : vector<8x128xf32> to vector<8x32xf32>
    %196 = vector.extract_strided_slice %194 {offsets = [0, 0], sizes = [8, 32], strides = [1, 1]} : vector<8x128xf32> to vector<8x32xf32>
    %197 = arith.addf %195, %196 : vector<8x32xf32>
    %cst_56 = arith.constant 5.000000e-01 : f32
    %198 = vector.broadcast %cst_56 : f32 to vector<8x32xf32>
    %199 = arith.mulf %197, %198 : vector<8x32xf32>
    %200 = math.tanh %199 : vector<8x32xf32>
    %cst_57 = arith.constant 5.000000e-01 : f32
    %201 = vector.broadcast %cst_57 : f32 to vector<8x32xf32>
    %202 = arith.mulf %200, %201 : vector<8x32xf32>
    %cst_58 = arith.constant 5.000000e-01 : f32
    %203 = vector.broadcast %cst_58 : f32 to vector<8x32xf32>
    %204 = arith.addf %202, %203 : vector<8x32xf32>
    %205 = vector.extract_strided_slice %192 {offsets = [0, 32], sizes = [8, 32], strides = [1, 1]} : vector<8x128xf32> to vector<8x32xf32>
    %206 = vector.extract_strided_slice %194 {offsets = [0, 32], sizes = [8, 32], strides = [1, 1]} : vector<8x128xf32> to vector<8x32xf32>
    %207 = arith.addf %205, %206 : vector<8x32xf32>
    %cst_59 = arith.constant 5.000000e-01 : f32
    %208 = vector.broadcast %cst_59 : f32 to vector<8x32xf32>
    %209 = arith.mulf %207, %208 : vector<8x32xf32>
    %210 = math.tanh %209 : vector<8x32xf32>
    %cst_60 = arith.constant 5.000000e-01 : f32
    %211 = vector.broadcast %cst_60 : f32 to vector<8x32xf32>
    %212 = arith.mulf %210, %211 : vector<8x32xf32>
    %cst_61 = arith.constant 5.000000e-01 : f32
    %213 = vector.broadcast %cst_61 : f32 to vector<8x32xf32>
    %214 = arith.addf %212, %213 : vector<8x32xf32>
    %215 = vector.extract_strided_slice %192 {offsets = [0, 64], sizes = [8, 32], strides = [1, 1]} : vector<8x128xf32> to vector<8x32xf32>
    %216 = vector.extract_strided_slice %194 {offsets = [0, 64], sizes = [8, 32], strides = [1, 1]} : vector<8x128xf32> to vector<8x32xf32>
    %217 = arith.mulf %204, %216 : vector<8x32xf32>
    %218 = arith.addf %215, %217 : vector<8x32xf32>
    %219 = math.tanh %218 : vector<8x32xf32>
    %220 = arith.subf %164, %219 : vector<8x32xf32>
    %221 = arith.mulf %214, %220 : vector<8x32xf32>
    %222 = arith.addf %219, %221 : vector<8x32xf32>
    %223 = tpu.concatenate %222, %191 in 1 : vector<8x32xf32>, vector<8x32xf32> -> vector<8x64xf32>
    %cst_62 = arith.constant dense<0.000000e+00> : vector<8x128xf32>
    %224 = tpu.matmul %223, %9, %cst_62 {dimension_numbers = #tpu.dot_dimension_numbers<[1], [0], [0], [1], [0, 0, 1, 1], [], []>} : vector<8x64xf32>, vector<64x128xf32>, vector<8x128xf32> -> vector<8x128xf32>
    %225 = arith.addf %224, %15 : vector<8x128xf32>
    %226 = vector.extract_strided_slice %225 {offsets = [0, 0], sizes = [8, 32], strides = [1, 1]} : vector<8x128xf32> to vector<8x32xf32>
    %cst_63 = arith.constant 5.000000e-01 : f32
    %227 = vector.broadcast %cst_63 : f32 to vector<8x32xf32>
    %228 = arith.mulf %226, %227 : vector<8x32xf32>
    %229 = math.tanh %228 : vector<8x32xf32>
    %cst_64 = arith.constant 5.000000e-01 : f32
    %230 = vector.broadcast %cst_64 : f32 to vector<8x32xf32>
    %231 = arith.mulf %229, %230 : vector<8x32xf32>
    %cst_65 = arith.constant 5.000000e-01 : f32
    %232 = vector.broadcast %cst_65 : f32 to vector<8x32xf32>
    %233 = arith.addf %231, %232 : vector<8x32xf32>
    %234 = vector.extract_strided_slice %225 {offsets = [0, 32], sizes = [8, 32], strides = [1, 1]} : vector<8x128xf32> to vector<8x32xf32>
    %cst_66 = arith.constant 5.000000e-01 : f32
    %235 = vector.broadcast %cst_66 : f32 to vector<8x32xf32>
    %236 = arith.mulf %234, %235 : vector<8x32xf32>
    %237 = math.tanh %236 : vector<8x32xf32>
    %cst_67 = arith.constant 5.000000e-01 : f32
    %238 = vector.broadcast %cst_67 : f32 to vector<8x32xf32>
    %239 = arith.mulf %237, %238 : vector<8x32xf32>
    %cst_68 = arith.constant 5.000000e-01 : f32
    %240 = vector.broadcast %cst_68 : f32 to vector<8x32xf32>
    %241 = arith.addf %239, %240 : vector<8x32xf32>
    %242 = vector.extract_strided_slice %225 {offsets = [0, 64], sizes = [8, 32], strides = [1, 1]} : vector<8x128xf32> to vector<8x32xf32>
    %243 = vector.extract_strided_slice %225 {offsets = [0, 96], sizes = [8, 32], strides = [1, 1]} : vector<8x128xf32> to vector<8x32xf32>
    %244 = arith.mulf %233, %243 : vector<8x32xf32>
    %245 = arith.addf %242, %244 : vector<8x32xf32>
    %246 = math.tanh %245 : vector<8x32xf32>
    %247 = arith.subf %191, %246 : vector<8x32xf32>
    %248 = arith.mulf %241, %247 : vector<8x32xf32>
    %249 = arith.addf %246, %248 : vector<8x32xf32>
    %250 = vector.extract_strided_slice %7 {offsets = [32, 0], sizes = [8, 128], strides = [1, 1]} : vector<64x128xf32> to vector<8x128xf32>
    %cst_69 = arith.constant dense<0.000000e+00> : vector<8x128xf32>
    %251 = tpu.matmul %222, %8, %cst_69 {dimension_numbers = #tpu.dot_dimension_numbers<[1], [0], [0], [1], [0, 0, 1, 1], [], []>} : vector<8x32xf32>, vector<32x128xf32>, vector<8x128xf32> -> vector<8x128xf32>
    %252 = arith.addf %251, %12 : vector<8x128xf32>
    %253 = vector.extract_strided_slice %250 {offsets = [0, 0], sizes = [8, 32], strides = [1, 1]} : vector<8x128xf32> to vector<8x32xf32>
    %254 = vector.extract_strided_slice %252 {offsets = [0, 0], sizes = [8, 32], strides = [1, 1]} : vector<8x128xf32> to vector<8x32xf32>
    %255 = arith.addf %253, %254 : vector<8x32xf32>
    %cst_70 = arith.constant 5.000000e-01 : f32
    %256 = vector.broadcast %cst_70 : f32 to vector<8x32xf32>
    %257 = arith.mulf %255, %256 : vector<8x32xf32>
    %258 = math.tanh %257 : vector<8x32xf32>
    %cst_71 = arith.constant 5.000000e-01 : f32
    %259 = vector.broadcast %cst_71 : f32 to vector<8x32xf32>
    %260 = arith.mulf %258, %259 : vector<8x32xf32>
    %cst_72 = arith.constant 5.000000e-01 : f32
    %261 = vector.broadcast %cst_72 : f32 to vector<8x32xf32>
    %262 = arith.addf %260, %261 : vector<8x32xf32>
    %263 = vector.extract_strided_slice %250 {offsets = [0, 32], sizes = [8, 32], strides = [1, 1]} : vector<8x128xf32> to vector<8x32xf32>
    %264 = vector.extract_strided_slice %252 {offsets = [0, 32], sizes = [8, 32], strides = [1, 1]} : vector<8x128xf32> to vector<8x32xf32>
    %265 = arith.addf %263, %264 : vector<8x32xf32>
    %cst_73 = arith.constant 5.000000e-01 : f32
    %266 = vector.broadcast %cst_73 : f32 to vector<8x32xf32>
    %267 = arith.mulf %265, %266 : vector<8x32xf32>
    %268 = math.tanh %267 : vector<8x32xf32>
    %cst_74 = arith.constant 5.000000e-01 : f32
    %269 = vector.broadcast %cst_74 : f32 to vector<8x32xf32>
    %270 = arith.mulf %268, %269 : vector<8x32xf32>
    %cst_75 = arith.constant 5.000000e-01 : f32
    %271 = vector.broadcast %cst_75 : f32 to vector<8x32xf32>
    %272 = arith.addf %270, %271 : vector<8x32xf32>
    %273 = vector.extract_strided_slice %250 {offsets = [0, 64], sizes = [8, 32], strides = [1, 1]} : vector<8x128xf32> to vector<8x32xf32>
    %274 = vector.extract_strided_slice %252 {offsets = [0, 64], sizes = [8, 32], strides = [1, 1]} : vector<8x128xf32> to vector<8x32xf32>
    %275 = arith.mulf %262, %274 : vector<8x32xf32>
    %276 = arith.addf %273, %275 : vector<8x32xf32>
    %277 = math.tanh %276 : vector<8x32xf32>
    %278 = arith.subf %222, %277 : vector<8x32xf32>
    %279 = arith.mulf %272, %278 : vector<8x32xf32>
    %280 = arith.addf %277, %279 : vector<8x32xf32>
    %281 = tpu.concatenate %280, %249 in 1 : vector<8x32xf32>, vector<8x32xf32> -> vector<8x64xf32>
    %cst_76 = arith.constant dense<0.000000e+00> : vector<8x128xf32>
    %282 = tpu.matmul %281, %9, %cst_76 {dimension_numbers = #tpu.dot_dimension_numbers<[1], [0], [0], [1], [0, 0, 1, 1], [], []>} : vector<8x64xf32>, vector<64x128xf32>, vector<8x128xf32> -> vector<8x128xf32>
    %283 = arith.addf %282, %15 : vector<8x128xf32>
    %284 = vector.extract_strided_slice %283 {offsets = [0, 0], sizes = [8, 32], strides = [1, 1]} : vector<8x128xf32> to vector<8x32xf32>
    %cst_77 = arith.constant 5.000000e-01 : f32
    %285 = vector.broadcast %cst_77 : f32 to vector<8x32xf32>
    %286 = arith.mulf %284, %285 : vector<8x32xf32>
    %287 = math.tanh %286 : vector<8x32xf32>
    %cst_78 = arith.constant 5.000000e-01 : f32
    %288 = vector.broadcast %cst_78 : f32 to vector<8x32xf32>
    %289 = arith.mulf %287, %288 : vector<8x32xf32>
    %cst_79 = arith.constant 5.000000e-01 : f32
    %290 = vector.broadcast %cst_79 : f32 to vector<8x32xf32>
    %291 = arith.addf %289, %290 : vector<8x32xf32>
    %292 = vector.extract_strided_slice %283 {offsets = [0, 32], sizes = [8, 32], strides = [1, 1]} : vector<8x128xf32> to vector<8x32xf32>
    %cst_80 = arith.constant 5.000000e-01 : f32
    %293 = vector.broadcast %cst_80 : f32 to vector<8x32xf32>
    %294 = arith.mulf %292, %293 : vector<8x32xf32>
    %295 = math.tanh %294 : vector<8x32xf32>
    %cst_81 = arith.constant 5.000000e-01 : f32
    %296 = vector.broadcast %cst_81 : f32 to vector<8x32xf32>
    %297 = arith.mulf %295, %296 : vector<8x32xf32>
    %cst_82 = arith.constant 5.000000e-01 : f32
    %298 = vector.broadcast %cst_82 : f32 to vector<8x32xf32>
    %299 = arith.addf %297, %298 : vector<8x32xf32>
    %300 = vector.extract_strided_slice %283 {offsets = [0, 64], sizes = [8, 32], strides = [1, 1]} : vector<8x128xf32> to vector<8x32xf32>
    %301 = vector.extract_strided_slice %283 {offsets = [0, 96], sizes = [8, 32], strides = [1, 1]} : vector<8x128xf32> to vector<8x32xf32>
    %302 = arith.mulf %291, %301 : vector<8x32xf32>
    %303 = arith.addf %300, %302 : vector<8x32xf32>
    %304 = math.tanh %303 : vector<8x32xf32>
    %305 = arith.subf %249, %304 : vector<8x32xf32>
    %306 = arith.mulf %299, %305 : vector<8x32xf32>
    %307 = arith.addf %304, %306 : vector<8x32xf32>
    %308 = vector.extract_strided_slice %7 {offsets = [40, 0], sizes = [8, 128], strides = [1, 1]} : vector<64x128xf32> to vector<8x128xf32>
    %cst_83 = arith.constant dense<0.000000e+00> : vector<8x128xf32>
    %309 = tpu.matmul %280, %8, %cst_83 {dimension_numbers = #tpu.dot_dimension_numbers<[1], [0], [0], [1], [0, 0, 1, 1], [], []>} : vector<8x32xf32>, vector<32x128xf32>, vector<8x128xf32> -> vector<8x128xf32>
    %310 = arith.addf %309, %12 : vector<8x128xf32>
    %311 = vector.extract_strided_slice %308 {offsets = [0, 0], sizes = [8, 32], strides = [1, 1]} : vector<8x128xf32> to vector<8x32xf32>
    %312 = vector.extract_strided_slice %310 {offsets = [0, 0], sizes = [8, 32], strides = [1, 1]} : vector<8x128xf32> to vector<8x32xf32>
    %313 = arith.addf %311, %312 : vector<8x32xf32>
    %cst_84 = arith.constant 5.000000e-01 : f32
    %314 = vector.broadcast %cst_84 : f32 to vector<8x32xf32>
    %315 = arith.mulf %313, %314 : vector<8x32xf32>
    %316 = math.tanh %315 : vector<8x32xf32>
    %cst_85 = arith.constant 5.000000e-01 : f32
    %317 = vector.broadcast %cst_85 : f32 to vector<8x32xf32>
    %318 = arith.mulf %316, %317 : vector<8x32xf32>
    %cst_86 = arith.constant 5.000000e-01 : f32
    %319 = vector.broadcast %cst_86 : f32 to vector<8x32xf32>
    %320 = arith.addf %318, %319 : vector<8x32xf32>
    %321 = vector.extract_strided_slice %308 {offsets = [0, 32], sizes = [8, 32], strides = [1, 1]} : vector<8x128xf32> to vector<8x32xf32>
    %322 = vector.extract_strided_slice %310 {offsets = [0, 32], sizes = [8, 32], strides = [1, 1]} : vector<8x128xf32> to vector<8x32xf32>
    %323 = arith.addf %321, %322 : vector<8x32xf32>
    %cst_87 = arith.constant 5.000000e-01 : f32
    %324 = vector.broadcast %cst_87 : f32 to vector<8x32xf32>
    %325 = arith.mulf %323, %324 : vector<8x32xf32>
    %326 = math.tanh %325 : vector<8x32xf32>
    %cst_88 = arith.constant 5.000000e-01 : f32
    %327 = vector.broadcast %cst_88 : f32 to vector<8x32xf32>
    %328 = arith.mulf %326, %327 : vector<8x32xf32>
    %cst_89 = arith.constant 5.000000e-01 : f32
    %329 = vector.broadcast %cst_89 : f32 to vector<8x32xf32>
    %330 = arith.addf %328, %329 : vector<8x32xf32>
    %331 = vector.extract_strided_slice %308 {offsets = [0, 64], sizes = [8, 32], strides = [1, 1]} : vector<8x128xf32> to vector<8x32xf32>
    %332 = vector.extract_strided_slice %310 {offsets = [0, 64], sizes = [8, 32], strides = [1, 1]} : vector<8x128xf32> to vector<8x32xf32>
    %333 = arith.mulf %320, %332 : vector<8x32xf32>
    %334 = arith.addf %331, %333 : vector<8x32xf32>
    %335 = math.tanh %334 : vector<8x32xf32>
    %336 = arith.subf %280, %335 : vector<8x32xf32>
    %337 = arith.mulf %330, %336 : vector<8x32xf32>
    %338 = arith.addf %335, %337 : vector<8x32xf32>
    %339 = tpu.concatenate %338, %307 in 1 : vector<8x32xf32>, vector<8x32xf32> -> vector<8x64xf32>
    %cst_90 = arith.constant dense<0.000000e+00> : vector<8x128xf32>
    %340 = tpu.matmul %339, %9, %cst_90 {dimension_numbers = #tpu.dot_dimension_numbers<[1], [0], [0], [1], [0, 0, 1, 1], [], []>} : vector<8x64xf32>, vector<64x128xf32>, vector<8x128xf32> -> vector<8x128xf32>
    %341 = arith.addf %340, %15 : vector<8x128xf32>
    %342 = vector.extract_strided_slice %341 {offsets = [0, 0], sizes = [8, 32], strides = [1, 1]} : vector<8x128xf32> to vector<8x32xf32>
    %cst_91 = arith.constant 5.000000e-01 : f32
    %343 = vector.broadcast %cst_91 : f32 to vector<8x32xf32>
    %344 = arith.mulf %342, %343 : vector<8x32xf32>
    %345 = math.tanh %344 : vector<8x32xf32>
    %cst_92 = arith.constant 5.000000e-01 : f32
    %346 = vector.broadcast %cst_92 : f32 to vector<8x32xf32>
    %347 = arith.mulf %345, %346 : vector<8x32xf32>
    %cst_93 = arith.constant 5.000000e-01 : f32
    %348 = vector.broadcast %cst_93 : f32 to vector<8x32xf32>
    %349 = arith.addf %347, %348 : vector<8x32xf32>
    %350 = vector.extract_strided_slice %341 {offsets = [0, 32], sizes = [8, 32], strides = [1, 1]} : vector<8x128xf32> to vector<8x32xf32>
    %cst_94 = arith.constant 5.000000e-01 : f32
    %351 = vector.broadcast %cst_94 : f32 to vector<8x32xf32>
    %352 = arith.mulf %350, %351 : vector<8x32xf32>
    %353 = math.tanh %352 : vector<8x32xf32>
    %cst_95 = arith.constant 5.000000e-01 : f32
    %354 = vector.broadcast %cst_95 : f32 to vector<8x32xf32>
    %355 = arith.mulf %353, %354 : vector<8x32xf32>
    %cst_96 = arith.constant 5.000000e-01 : f32
    %356 = vector.broadcast %cst_96 : f32 to vector<8x32xf32>
    %357 = arith.addf %355, %356 : vector<8x32xf32>
    %358 = vector.extract_strided_slice %341 {offsets = [0, 64], sizes = [8, 32], strides = [1, 1]} : vector<8x128xf32> to vector<8x32xf32>
    %359 = vector.extract_strided_slice %341 {offsets = [0, 96], sizes = [8, 32], strides = [1, 1]} : vector<8x128xf32> to vector<8x32xf32>
    %360 = arith.mulf %349, %359 : vector<8x32xf32>
    %361 = arith.addf %358, %360 : vector<8x32xf32>
    %362 = math.tanh %361 : vector<8x32xf32>
    %363 = arith.subf %307, %362 : vector<8x32xf32>
    %364 = arith.mulf %357, %363 : vector<8x32xf32>
    %365 = arith.addf %362, %364 : vector<8x32xf32>
    %366 = vector.extract_strided_slice %7 {offsets = [48, 0], sizes = [8, 128], strides = [1, 1]} : vector<64x128xf32> to vector<8x128xf32>
    %cst_97 = arith.constant dense<0.000000e+00> : vector<8x128xf32>
    %367 = tpu.matmul %338, %8, %cst_97 {dimension_numbers = #tpu.dot_dimension_numbers<[1], [0], [0], [1], [0, 0, 1, 1], [], []>} : vector<8x32xf32>, vector<32x128xf32>, vector<8x128xf32> -> vector<8x128xf32>
    %368 = arith.addf %367, %12 : vector<8x128xf32>
    %369 = vector.extract_strided_slice %366 {offsets = [0, 0], sizes = [8, 32], strides = [1, 1]} : vector<8x128xf32> to vector<8x32xf32>
    %370 = vector.extract_strided_slice %368 {offsets = [0, 0], sizes = [8, 32], strides = [1, 1]} : vector<8x128xf32> to vector<8x32xf32>
    %371 = arith.addf %369, %370 : vector<8x32xf32>
    %cst_98 = arith.constant 5.000000e-01 : f32
    %372 = vector.broadcast %cst_98 : f32 to vector<8x32xf32>
    %373 = arith.mulf %371, %372 : vector<8x32xf32>
    %374 = math.tanh %373 : vector<8x32xf32>
    %cst_99 = arith.constant 5.000000e-01 : f32
    %375 = vector.broadcast %cst_99 : f32 to vector<8x32xf32>
    %376 = arith.mulf %374, %375 : vector<8x32xf32>
    %cst_100 = arith.constant 5.000000e-01 : f32
    %377 = vector.broadcast %cst_100 : f32 to vector<8x32xf32>
    %378 = arith.addf %376, %377 : vector<8x32xf32>
    %379 = vector.extract_strided_slice %366 {offsets = [0, 32], sizes = [8, 32], strides = [1, 1]} : vector<8x128xf32> to vector<8x32xf32>
    %380 = vector.extract_strided_slice %368 {offsets = [0, 32], sizes = [8, 32], strides = [1, 1]} : vector<8x128xf32> to vector<8x32xf32>
    %381 = arith.addf %379, %380 : vector<8x32xf32>
    %cst_101 = arith.constant 5.000000e-01 : f32
    %382 = vector.broadcast %cst_101 : f32 to vector<8x32xf32>
    %383 = arith.mulf %381, %382 : vector<8x32xf32>
    %384 = math.tanh %383 : vector<8x32xf32>
    %cst_102 = arith.constant 5.000000e-01 : f32
    %385 = vector.broadcast %cst_102 : f32 to vector<8x32xf32>
    %386 = arith.mulf %384, %385 : vector<8x32xf32>
    %cst_103 = arith.constant 5.000000e-01 : f32
    %387 = vector.broadcast %cst_103 : f32 to vector<8x32xf32>
    %388 = arith.addf %386, %387 : vector<8x32xf32>
    %389 = vector.extract_strided_slice %366 {offsets = [0, 64], sizes = [8, 32], strides = [1, 1]} : vector<8x128xf32> to vector<8x32xf32>
    %390 = vector.extract_strided_slice %368 {offsets = [0, 64], sizes = [8, 32], strides = [1, 1]} : vector<8x128xf32> to vector<8x32xf32>
    %391 = arith.mulf %378, %390 : vector<8x32xf32>
    %392 = arith.addf %389, %391 : vector<8x32xf32>
    %393 = math.tanh %392 : vector<8x32xf32>
    %394 = arith.subf %338, %393 : vector<8x32xf32>
    %395 = arith.mulf %388, %394 : vector<8x32xf32>
    %396 = arith.addf %393, %395 : vector<8x32xf32>
    %397 = tpu.concatenate %396, %365 in 1 : vector<8x32xf32>, vector<8x32xf32> -> vector<8x64xf32>
    %cst_104 = arith.constant dense<0.000000e+00> : vector<8x128xf32>
    %398 = tpu.matmul %397, %9, %cst_104 {dimension_numbers = #tpu.dot_dimension_numbers<[1], [0], [0], [1], [0, 0, 1, 1], [], []>} : vector<8x64xf32>, vector<64x128xf32>, vector<8x128xf32> -> vector<8x128xf32>
    %399 = arith.addf %398, %15 : vector<8x128xf32>
    %400 = vector.extract_strided_slice %399 {offsets = [0, 0], sizes = [8, 32], strides = [1, 1]} : vector<8x128xf32> to vector<8x32xf32>
    %cst_105 = arith.constant 5.000000e-01 : f32
    %401 = vector.broadcast %cst_105 : f32 to vector<8x32xf32>
    %402 = arith.mulf %400, %401 : vector<8x32xf32>
    %403 = math.tanh %402 : vector<8x32xf32>
    %cst_106 = arith.constant 5.000000e-01 : f32
    %404 = vector.broadcast %cst_106 : f32 to vector<8x32xf32>
    %405 = arith.mulf %403, %404 : vector<8x32xf32>
    %cst_107 = arith.constant 5.000000e-01 : f32
    %406 = vector.broadcast %cst_107 : f32 to vector<8x32xf32>
    %407 = arith.addf %405, %406 : vector<8x32xf32>
    %408 = vector.extract_strided_slice %399 {offsets = [0, 32], sizes = [8, 32], strides = [1, 1]} : vector<8x128xf32> to vector<8x32xf32>
    %cst_108 = arith.constant 5.000000e-01 : f32
    %409 = vector.broadcast %cst_108 : f32 to vector<8x32xf32>
    %410 = arith.mulf %408, %409 : vector<8x32xf32>
    %411 = math.tanh %410 : vector<8x32xf32>
    %cst_109 = arith.constant 5.000000e-01 : f32
    %412 = vector.broadcast %cst_109 : f32 to vector<8x32xf32>
    %413 = arith.mulf %411, %412 : vector<8x32xf32>
    %cst_110 = arith.constant 5.000000e-01 : f32
    %414 = vector.broadcast %cst_110 : f32 to vector<8x32xf32>
    %415 = arith.addf %413, %414 : vector<8x32xf32>
    %416 = vector.extract_strided_slice %399 {offsets = [0, 64], sizes = [8, 32], strides = [1, 1]} : vector<8x128xf32> to vector<8x32xf32>
    %417 = vector.extract_strided_slice %399 {offsets = [0, 96], sizes = [8, 32], strides = [1, 1]} : vector<8x128xf32> to vector<8x32xf32>
    %418 = arith.mulf %407, %417 : vector<8x32xf32>
    %419 = arith.addf %416, %418 : vector<8x32xf32>
    %420 = math.tanh %419 : vector<8x32xf32>
    %421 = arith.subf %365, %420 : vector<8x32xf32>
    %422 = arith.mulf %415, %421 : vector<8x32xf32>
    %423 = arith.addf %420, %422 : vector<8x32xf32>
    %424 = vector.extract_strided_slice %7 {offsets = [56, 0], sizes = [8, 128], strides = [1, 1]} : vector<64x128xf32> to vector<8x128xf32>
    %cst_111 = arith.constant dense<0.000000e+00> : vector<8x128xf32>
    %425 = tpu.matmul %396, %8, %cst_111 {dimension_numbers = #tpu.dot_dimension_numbers<[1], [0], [0], [1], [0, 0, 1, 1], [], []>} : vector<8x32xf32>, vector<32x128xf32>, vector<8x128xf32> -> vector<8x128xf32>
    %426 = arith.addf %425, %12 : vector<8x128xf32>
    %427 = vector.extract_strided_slice %424 {offsets = [0, 0], sizes = [8, 32], strides = [1, 1]} : vector<8x128xf32> to vector<8x32xf32>
    %428 = vector.extract_strided_slice %426 {offsets = [0, 0], sizes = [8, 32], strides = [1, 1]} : vector<8x128xf32> to vector<8x32xf32>
    %429 = arith.addf %427, %428 : vector<8x32xf32>
    %cst_112 = arith.constant 5.000000e-01 : f32
    %430 = vector.broadcast %cst_112 : f32 to vector<8x32xf32>
    %431 = arith.mulf %429, %430 : vector<8x32xf32>
    %432 = math.tanh %431 : vector<8x32xf32>
    %cst_113 = arith.constant 5.000000e-01 : f32
    %433 = vector.broadcast %cst_113 : f32 to vector<8x32xf32>
    %434 = arith.mulf %432, %433 : vector<8x32xf32>
    %cst_114 = arith.constant 5.000000e-01 : f32
    %435 = vector.broadcast %cst_114 : f32 to vector<8x32xf32>
    %436 = arith.addf %434, %435 : vector<8x32xf32>
    %437 = vector.extract_strided_slice %424 {offsets = [0, 32], sizes = [8, 32], strides = [1, 1]} : vector<8x128xf32> to vector<8x32xf32>
    %438 = vector.extract_strided_slice %426 {offsets = [0, 32], sizes = [8, 32], strides = [1, 1]} : vector<8x128xf32> to vector<8x32xf32>
    %439 = arith.addf %437, %438 : vector<8x32xf32>
    %cst_115 = arith.constant 5.000000e-01 : f32
    %440 = vector.broadcast %cst_115 : f32 to vector<8x32xf32>
    %441 = arith.mulf %439, %440 : vector<8x32xf32>
    %442 = math.tanh %441 : vector<8x32xf32>
    %cst_116 = arith.constant 5.000000e-01 : f32
    %443 = vector.broadcast %cst_116 : f32 to vector<8x32xf32>
    %444 = arith.mulf %442, %443 : vector<8x32xf32>
    %cst_117 = arith.constant 5.000000e-01 : f32
    %445 = vector.broadcast %cst_117 : f32 to vector<8x32xf32>
    %446 = arith.addf %444, %445 : vector<8x32xf32>
    %447 = vector.extract_strided_slice %424 {offsets = [0, 64], sizes = [8, 32], strides = [1, 1]} : vector<8x128xf32> to vector<8x32xf32>
    %448 = vector.extract_strided_slice %426 {offsets = [0, 64], sizes = [8, 32], strides = [1, 1]} : vector<8x128xf32> to vector<8x32xf32>
    %449 = arith.mulf %436, %448 : vector<8x32xf32>
    %450 = arith.addf %447, %449 : vector<8x32xf32>
    %451 = math.tanh %450 : vector<8x32xf32>
    %452 = arith.subf %396, %451 : vector<8x32xf32>
    %453 = arith.mulf %446, %452 : vector<8x32xf32>
    %454 = arith.addf %451, %453 : vector<8x32xf32>
    %455 = tpu.concatenate %454, %423 in 1 : vector<8x32xf32>, vector<8x32xf32> -> vector<8x64xf32>
    %cst_118 = arith.constant dense<0.000000e+00> : vector<8x128xf32>
    %456 = tpu.matmul %455, %9, %cst_118 {dimension_numbers = #tpu.dot_dimension_numbers<[1], [0], [0], [1], [0, 0, 1, 1], [], []>} : vector<8x64xf32>, vector<64x128xf32>, vector<8x128xf32> -> vector<8x128xf32>
    %457 = arith.addf %456, %15 : vector<8x128xf32>
    %458 = vector.extract_strided_slice %457 {offsets = [0, 0], sizes = [8, 32], strides = [1, 1]} : vector<8x128xf32> to vector<8x32xf32>
    %cst_119 = arith.constant 5.000000e-01 : f32
    %459 = vector.broadcast %cst_119 : f32 to vector<8x32xf32>
    %460 = arith.mulf %458, %459 : vector<8x32xf32>
    %461 = math.tanh %460 : vector<8x32xf32>
    %cst_120 = arith.constant 5.000000e-01 : f32
    %462 = vector.broadcast %cst_120 : f32 to vector<8x32xf32>
    %463 = arith.mulf %461, %462 : vector<8x32xf32>
    %cst_121 = arith.constant 5.000000e-01 : f32
    %464 = vector.broadcast %cst_121 : f32 to vector<8x32xf32>
    %465 = arith.addf %463, %464 : vector<8x32xf32>
    %466 = vector.extract_strided_slice %457 {offsets = [0, 32], sizes = [8, 32], strides = [1, 1]} : vector<8x128xf32> to vector<8x32xf32>
    %cst_122 = arith.constant 5.000000e-01 : f32
    %467 = vector.broadcast %cst_122 : f32 to vector<8x32xf32>
    %468 = arith.mulf %466, %467 : vector<8x32xf32>
    %469 = math.tanh %468 : vector<8x32xf32>
    %cst_123 = arith.constant 5.000000e-01 : f32
    %470 = vector.broadcast %cst_123 : f32 to vector<8x32xf32>
    %471 = arith.mulf %469, %470 : vector<8x32xf32>
    %cst_124 = arith.constant 5.000000e-01 : f32
    %472 = vector.broadcast %cst_124 : f32 to vector<8x32xf32>
    %473 = arith.addf %471, %472 : vector<8x32xf32>
    %474 = vector.extract_strided_slice %457 {offsets = [0, 64], sizes = [8, 32], strides = [1, 1]} : vector<8x128xf32> to vector<8x32xf32>
    %475 = vector.extract_strided_slice %457 {offsets = [0, 96], sizes = [8, 32], strides = [1, 1]} : vector<8x128xf32> to vector<8x32xf32>
    %476 = arith.mulf %465, %475 : vector<8x32xf32>
    %477 = arith.addf %474, %476 : vector<8x32xf32>
    %478 = math.tanh %477 : vector<8x32xf32>
    %479 = arith.subf %423, %478 : vector<8x32xf32>
    %480 = arith.mulf %473, %479 : vector<8x32xf32>
    %481 = arith.addf %478, %480 : vector<8x32xf32>
    %cst_125 = arith.constant 0.000000e+00 : f32
    %482 = vector.broadcast %cst_125 : f32 to vector<8x32xf32>
    %483 = arith.maximumf %481, %482 : vector<8x32xf32>
    %c0_126 = arith.constant 0 : index
    %c0_127 = arith.constant 0 : index
    %484 = vector.load %arg6[%c0_126, %c0_127] : memref<32x128xf32, #tpu.memory_space<vmem>>, vector<32x128xf32>
    %cst_128 = arith.constant dense<0.000000e+00> : vector<8x128xf32>
    %485 = tpu.matmul %483, %484, %cst_128 {dimension_numbers = #tpu.dot_dimension_numbers<[1], [0], [0], [1], [0, 0, 1, 1], [], []>} : vector<8x32xf32>, vector<32x128xf32>, vector<8x128xf32> -> vector<8x128xf32>
    %c0_129 = arith.constant 0 : index
    %c0_130 = arith.constant 0 : index
    %486 = vector.load %arg7[%c0_129, %c0_130] : memref<1x128xf32, #tpu.memory_space<vmem>>, vector<1x128xf32>
    %487 = vector.broadcast %486 : vector<1x128xf32> to vector<8x128xf32>
    %488 = arith.addf %485, %487 : vector<8x128xf32>
    %c0_131 = arith.constant 0 : index
    %c0_132 = arith.constant 0 : index
    %489 = vector.load %arg8[%c0_131, %c0_132] : memref<8x128xf32, #tpu.memory_space<vmem>>, vector<8x128xf32>
    tpu.vector_store %arg8[%c0_131, %c0_132], %488 {strides = array<i32>} : memref<8x128xf32, #tpu.memory_space<vmem>>, vector<8x128xf32>,
    return
  }
}

</mosaic_0001>

<llo_original>
// kernel: progargnet_forward.1
$region0: #{progargnet_forward.1}
  #allocation0 [shape = 'u32[]', space=smem, size = 0x4, offset = 0x4, fixed_abs, tag = 'smem constant byte address 0x4 - core index']
  #allocation1 [shape = 'u32[72,128]{1,0:T(1,128)}', space=vmem, size = 0x9000, scoped, tag = 'internal scratch']
  %s0 = inlined_call_operand.vmem [shape: s32[64,1], index: 0, kind: input, shape index: {}]
  %s1 = inlined_call_operand.hbm [shape: f32[56,128], index: 1, kind: input, shape index: {}]
  %s2 = inlined_call_operand.vmem [shape: f32[32,128], index: 2, kind: input, shape index: {}]
  %s3 = inlined_call_operand.vmem [shape: f32[1,128], index: 3, kind: input, shape index: {}]
  %s4 = inlined_call_operand.vmem [shape: f32[64,128], index: 4, kind: input, shape index: {}]
  %s5 = inlined_call_operand.vmem [shape: f32[1,128], index: 5, kind: input, shape index: {}]
  %s6 = inlined_call_operand.hbm [shape: f32[32,128], index: 6, kind: input, shape index: {}]
  %s7 = inlined_call_operand.vmem [shape: f32[1,128], index: 7, kind: input, shape index: {}]
  %s8 = inlined_call_operand.vmem [shape: f32[8,128], index: 8, kind: output, shape index: {}]
  %s9 = sld [smem:[#allocation0]]
  $region50: #{progargnet_forward.1} parent=0
    _
  %s11 = ssub.s32 1, %s9
  %s12 = scalar_select 0, %s11, %s9
  $region1: #{progargnet_forward.1} parent=0
    #allocation2 [shape = 'u8[28672]{0}', space=vmem, size = 0x7000, scoped, tag = 'input window, operand 1, single buffered']
    #allocation3 [shape = 's32[1]{0}', space=sflag, size = 0x4, scoped, tag = 'scoped memory for progargnet_forward.1']
    #allocation4 [shape = 'u8[16384]{0}', space=vmem, size = 0x4000, scoped, tag = 'input window, operand 6, single buffered']
    #allocation5 [shape = 's32[1]{0}', space=sflag, size = 0x4, scoped, tag = 'scoped memory for progargnet_forward.1']
    %13 = vsyncpa [#allocation3], 0
    %14 = vsyncpa [#allocation5], 0
    // Predicated region
    $region2: #{progargnet_forward.1} parent=1 // pred_check
      _
    $region3: #{progargnet_forward.1} parent=1 // pred_check_branch
      %16 = sbr.rel (0) target = $region5
    $region4: #{progargnet_forward.1} parent=1 // pred_region
      _
    $region5: #{progargnet_forward.1} parent=1 // pred_fallthru
      _
    // Predicated region
    $region6: #{progargnet_forward.1} parent=1 // pred_check
      _
    $region7: #{progargnet_forward.1} parent=1 // pred_check_branch
      %18 = sbr.rel (0) target = $region9
    $region8: #{progargnet_forward.1} parent=1 // pred_region
      %20 = vsyncadd [#allocation3], 0
      %s21 = sshll.u32 %s1, 4
      %s22 = int_to_ptr.hbm [resolvable:$true] %s21
      %s23 = sshll.u32 [#allocation2], 4
      %s24 = int_to_ptr.vmem [resolvable:$true] %s23
      %29 = dma.hbm_to_vmem [thread:$0]  %s22, 896, %s24, [#allocation3], 128, 128, 8
    $region9: #{progargnet_forward.1} parent=1 // pred_fallthru
      _
    // Predicated region
    $region10: #{progargnet_forward.1} parent=1 // pred_check
      _
    $region11: #{progargnet_forward.1} parent=1 // pred_check_branch
      %31 = sbr.rel (0) target = $region13
    $region12: #{progargnet_forward.1} parent=1 // pred_region
      _
    $region13: #{progargnet_forward.1} parent=1 // pred_fallthru
      _
    // Predicated region
    $region14: #{progargnet_forward.1} parent=1 // pred_check
      _
    $region15: #{progargnet_forward.1} parent=1 // pred_check_branch
      %33 = sbr.rel (0) target = $region17
    $region16: #{progargnet_forward.1} parent=1 // pred_region
      _
    $region17: #{progargnet_forward.1} parent=1 // pred_fallthru
      _
    // Predicated region
    $region18: #{progargnet_forward.1} parent=1 // pred_check
      _
    $region19: #{progargnet_forward.1} parent=1 // pred_check_branch
      %35 = sbr.rel (0) target = $region21
    $region20: #{progargnet_forward.1} parent=1 // pred_region
      _
    $region21: #{progargnet_forward.1} parent=1 // pred_fallthru
      _
    // Predicated region
    $region22: #{progargnet_forward.1} parent=1 // pred_check
      _
    $region23: #{progargnet_forward.1} parent=1 // pred_check_branch
      %37 = sbr.rel (0) target = $region25
    $region24: #{progargnet_forward.1} parent=1 // pred_region
      _
    $region25: #{progargnet_forward.1} parent=1 // pred_fallthru
      _
    // Predicated region
    $region26: #{progargnet_forward.1} parent=1 // pred_check
      _
    $region27: #{progargnet_forward.1} parent=1 // pred_check_branch
      %39 = sbr.rel (0) target = $region29
    $region28: #{progargnet_forward.1} parent=1 // pred_region
      %41 = vsyncadd [#allocation5], 0
      %s42 = sshll.u32 %s6, 4
      %s43 = int_to_ptr.hbm [resolvable:$true] %s42
      %s44 = sshll.u32 [#allocation4], 4
      %s45 = int_to_ptr.vmem [resolvable:$true] %s44
      %50 = dma.hbm_to_vmem [thread:$0]  %s43, 512, %s45, [#allocation5], 128, 128, 8
    $region29: #{progargnet_forward.1} parent=1 // pred_fallthru
      _
    // Predicated region
    $region30: #{progargnet_forward.1} parent=1 // pred_check
      _
    $region31: #{progargnet_forward.1} parent=1 // pred_check_branch
      %52 = sbr.rel (0) target = $region33
    $region32: #{progargnet_forward.1} parent=1 // pred_region
      _
    $region33: #{progargnet_forward.1} parent=1 // pred_fallthru
      _
    // Predicated region
    $region34: #{progargnet_forward.1} parent=1 // pred_check
      _
    $region35: #{progargnet_forward.1} parent=1 // pred_check_branch
      %54 = sbr.rel (0) target = $region37
    $region36: #{progargnet_forward.1} parent=1 // pred_region
      %56 = dma.done [#allocation3], 896
    $region37: #{progargnet_forward.1} parent=1 // pred_fallthru
      _
    // Predicated region
    $region38: #{progargnet_forward.1} parent=1 // pred_check
      _
    $region39: #{progargnet_forward.1} parent=1 // pred_check_branch
      %58 = sbr.rel (0) target = $region41
    $region40: #{progargnet_forward.1} parent=1 // pred_region
      %60 = dma.done [#allocation5], 512
    $region41: #{progargnet_forward.1} parent=1 // pred_fallthru
      _
    %v61 = vld [vmem:[%s0] sm:$0xff]
    %v62 = vld [vmem:[%s0 + $0x8] sm:$0xff]
    %v63 = vld [vmem:[%s0 + $0x10] sm:$0xff]
    %v64 = vld [vmem:[%s0 + $0x18] sm:$0xff]
    %v65 = vld [vmem:[%s0 + $0x20] sm:$0xff]
    %v66 = vld [vmem:[%s0 + $0x28] sm:$0xff]
    %v67 = vld [vmem:[%s0 + $0x30] sm:$0xff]
    %v68 = vld [vmem:[%s0 + $0x38] sm:$0xff]
    %v69 = vlaneseq
    %v70 = vand.u32 %v69, 127
    %71 = vset.pattern.permute.xlu0 0
    %72 = vperm.xlu0 %71, %v61
    %v73 = vpop.permute.xlu0 %72
    %74 = vset.pattern.permute.xlu0 0
    %75 = vperm.xlu0 %74, %v62
    %v76 = vpop.permute.xlu0 %75
    %77 = vset.pattern.permute.xlu0 0
    %78 = vperm.xlu0 %77, %v63
    %v79 = vpop.permute.xlu0 %78
    %80 = vset.pattern.permute.xlu0 0
    %81 = vperm.xlu0 %80, %v64
    %v82 = vpop.permute.xlu0 %81
    %83 = vset.pattern.permute.xlu0 0
    %84 = vperm.xlu0 %83, %v65
    %v85 = vpop.permute.xlu0 %84
    %86 = vset.pattern.permute.xlu0 0
    %87 = vperm.xlu0 %86, %v66
    %v88 = vpop.permute.xlu0 %87
    %89 = vset.pattern.permute.xlu0 0
    %90 = vperm.xlu0 %89, %v67
    %v91 = vpop.permute.xlu0 %90
    %92 = vset.pattern.permute.xlu0 0
    %93 = vperm.xlu0 %92, %v68
    %v94 = vpop.permute.xlu0 %93
    %vm95 = vcmp.eq.s32.totalorder %v73, %v70
    %vm96 = vcmp.eq.s32.totalorder %v76, %v70
    %vm97 = vcmp.eq.s32.totalorder %v79, %v70
    %vm98 = vcmp.eq.s32.totalorder %v82, %v70
    %vm99 = vcmp.eq.s32.totalorder %v85, %v70
    %vm100 = vcmp.eq.s32.totalorder %v88, %v70
    %vm101 = vcmp.eq.s32.totalorder %v91, %v70
    %vm102 = vcmp.eq.s32.totalorder %v94, %v70
    %v103 = vsel %vm95, 1, 0
    %v104 = vsel %vm96, 1, 0
    %v105 = vsel %vm97, 1, 0
    %v106 = vsel %vm98, 1, 0
    %v107 = vsel %vm99, 1, 0
    %v108 = vsel %vm100, 1, 0
    %v109 = vsel %vm101, 1, 0
    %v110 = vsel %vm102, 1, 0
    %v111 = vcvt.s32.f32 %v103
    %v112 = vcvt.s32.f32 %v104
    %v113 = vcvt.s32.f32 %v105
    %v114 = vcvt.s32.f32 %v106
    %v115 = vcvt.s32.f32 %v107
    %v116 = vcvt.s32.f32 %v108
    %v117 = vcvt.s32.f32 %v109
    %v118 = vcvt.s32.f32 %v110
    %v119 = vld [vmem:[#allocation2] sm:$0xff]
    %v120 = vld [vmem:[#allocation2 + $0x8] sm:$0xff]
    %v121 = vld [vmem:[#allocation2 + $0x10] sm:$0xff]
    %v122 = vld [vmem:[#allocation2 + $0x18] sm:$0xff]
    %v123 = vld [vmem:[#allocation2 + $0x20] sm:$0xff]
    %v124 = vld [vmem:[#allocation2 + $0x28] sm:$0xff]
    %v125 = vld [vmem:[#allocation2 + $0x30] sm:$0xff]
    %vm126 = vcmask 457728
    %v128 = vsel %vm126, %v111, 0
    %v131 = vsel %vm126, %v112, 0
    %v134 = vsel %vm126, %v113, 0
    %v137 = vsel %vm126, %v114, 0
    %v140 = vsel %vm126, %v115, 0
    %v143 = vsel %vm126, %v116, 0
    %v146 = vsel %vm126, %v117, 0
    %v149 = vsel %vm126, %v118, 0
    %151 = vmatpush.msra.mxu0 0.0
    %152 = vmatpush.msra.mxu0 0.0
    %153 = vmatpush.msra.mxu0 0.0
    %154 = vmatpush.msra.mxu0 0.0
    %155 = vmatpush.msra.mxu0 0.0
    %156 = vmatpush.msra.mxu0 0.0
    %157 = vmatpush.msra.mxu0 0.0
    %158 = vmatpush.msra.mxu0 0.0
    %159 = vmatpush.msra.mxu0 0.0
    %160 = vmatpush.msra.mxu0 %v125
    %161 = vmatpush.msra.mxu0 %v124
    %162 = vmatpush.msra.mxu0 %v123
    %163 = vmatpush.msra.mxu0 %v122
    %164 = vmatpush.msra.mxu0 %v121
    %165 = vmatpush.msra.mxu0 %v120
    %166 = vmatpush.msra.mxu0 %v119
    %167 = vmatmul.f32.gmra.mxu0 %v128
    %v168 = vpop.f32.mrf.mxu0
    %v169 = vadd.f32 0.0, %v168
    %170 = vmatmul.f32.gmra.mxu0 %v131
    %v171 = vpop.f32.mrf.mxu0
    %v172 = vadd.f32 0.0, %v171
    %173 = vmatmul.f32.gmra.mxu0 %v134
    %v174 = vpop.f32.mrf.mxu0
    %v175 = vadd.f32 0.0, %v174
    %176 = vmatmul.f32.gmra.mxu0 %v137
    %v177 = vpop.f32.mrf.mxu0
    %v178 = vadd.f32 0.0, %v177
    %179 = vmatmul.f32.gmra.mxu0 %v140
    %v180 = vpop.f32.mrf.mxu0
    %v181 = vadd.f32 0.0, %v180
    %182 = vmatmul.f32.gmra.mxu0 %v143
    %v183 = vpop.f32.mrf.mxu0
    %v184 = vadd.f32 0.0, %v183
    %185 = vmatmul.f32.gmra.mxu0 %v146
    %v186 = vpop.f32.mrf.mxu0
    %v187 = vadd.f32 0.0, %v186
    %188 = vmatmul.f32.gmra.mxu0 %v149
    %v189 = vpop.f32.mrf.mxu0
    %v190 = vadd.f32 0.0, %v189
    %191 = vdwg.mxu0
    %v192 = vld [vmem:[%s2] sm:$0xff]
    %v193 = vld [vmem:[%s2 + $0x8] sm:$0xff]
    %v194 = vld [vmem:[%s2 + $0x10] sm:$0xff]
    %v195 = vld [vmem:[%s2 + $0x18] sm:$0xff]
    %v196 = vld [vmem:[%s4] sm:$0xff]
    %v197 = vld [vmem:[%s4 + $0x8] sm:$0xff]
    %v198 = vld [vmem:[%s4 + $0x10] sm:$0xff]
    %v199 = vld [vmem:[%s4 + $0x18] sm:$0xff]
    %v200 = vld [vmem:[%s4 + $0x20] sm:$0xff]
    %v201 = vld [vmem:[%s4 + $0x28] sm:$0xff]
    %v202 = vld [vmem:[%s4 + $0x30] sm:$0xff]
    %v203 = vld [vmem:[%s4 + $0x38] sm:$0xff]
    %v204 = vld [vmem:[%s3] sm:$0x1]
    %v206 = vperm.slane %v204, 0
    %v208 = vld [vmem:[%s5] sm:$0x1]
    %v210 = vperm.slane %v208, 0
    %vm212 = vcmask 261120
    %v214 = vsel %vm212, 0.0, 0
    %216 = vmatpush.msra.mxu0 0.0
    %217 = vmatpush.msra.mxu0 0.0
    %218 = vmatpush.msra.mxu0 0.0
    %219 = vmatpush.msra.mxu0 0.0
    %220 = vmatpush.msra.mxu0 0.0
    %221 = vmatpush.msra.mxu0 0.0
    %222 = vmatpush.msra.mxu0 0.0
    %223 = vmatpush.msra.mxu0 0.0
    %224 = vmatpush.msra.mxu0 0.0
    %225 = vmatpush.msra.mxu0 0.0
    %226 = vmatpush.msra.mxu0 0.0
    %227 = vmatpush.msra.mxu0 0.0
    %228 = vmatpush.msra.mxu0 %v195
    %229 = vmatpush.msra.mxu0 %v194
    %230 = vmatpush.msra.mxu0 %v193
    %231 = vmatpush.msra.mxu0 %v192
    %232 = vmatmul.f32.gmra.mxu0 %v214
    %v233 = vpop.f32.mrf.mxu0
    %v234 = vadd.f32 %v206, %v233
    %235 = vdwg.mxu0
    %v236 = vadd.f32 %v169, %v234
    %v237 = vmul.f32 %v236, 0.5
    %v238 = vtanh.pop %v237
    %v239 = vmul.f32 %v238, 0.5
    %v240 = vadd.f32 %v239, 0.5
    %242 = vrot.lane.b32.xlu0 %v234, 64
    %v243 = vpop.permute.xlu0 %242
    %v245 = vmul.f32 %v240, %v243
    %247 = vrot.lane.b32.xlu0 %v245, 64
    %v248 = vpop.permute.xlu0 %247
    %v250 = vadd.f32 %v169, %v248
    %v251 = vtanh.pop %v250
    %v252 = vsub.f32 0.0, %v251
    %254 = vrot.lane.b32.xlu0 %v252, 96
    %v255 = vpop.permute.xlu0 %254
    %v257 = vmul.f32 %v240, %v255
    %259 = vrot.lane.b32.xlu0 %v257, 32
    %v260 = vpop.permute.xlu0 %259
    %v262 = vadd.f32 %v251, %v260
    %264 = vrot.lane.b32.xlu0 %v262, 64
    %v265 = vpop.permute.xlu0 %264
    %v267 = vsel %vm212, %v265, 0.0
    %vm268 = vcmask 523264
    %v270 = vsel %vm268, %v267, 0
    %272 = vmatpush.msra.mxu0 0.0
    %273 = vmatpush.msra.mxu0 0.0
    %274 = vmatpush.msra.mxu0 0.0
    %275 = vmatpush.msra.mxu0 0.0
    %276 = vmatpush.msra.mxu0 0.0
    %277 = vmatpush.msra.mxu0 0.0
    %278 = vmatpush.msra.mxu0 0.0
    %279 = vmatpush.msra.mxu0 0.0
    %280 = vmatpush.msra.mxu0 %v203
    %281 = vmatpush.msra.mxu0 %v202
    %282 = vmatpush.msra.mxu0 %v201
    %283 = vmatpush.msra.mxu0 %v200
    %284 = vmatpush.msra.mxu0 %v199
    %285 = vmatpush.msra.mxu0 %v198
    %286 = vmatpush.msra.mxu0 %v197
    %287 = vmatpush.msra.mxu0 %v196
    %288 = vmatmul.f32.gmra.mxu0 %v270
    %v289 = vpop.f32.mrf.mxu0
    %v290 = vadd.f32 %v210, %v289
    %291 = vdwg.mxu0
    %v292 = vmul.f32 %v290, 0.5
    %v293 = vtanh.pop %v292
    %v294 = vmul.f32 %v293, 0.5
    %v295 = vadd.f32 %v294, 0.5
    %297 = vrot.lane.b32.xlu0 %v290, 32
    %v298 = vpop.permute.xlu0 %297
    %v300 = vmul.f32 %v295, %v298
    %302 = vrot.lane.b32.xlu0 %v300, 64
    %v303 = vpop.permute.xlu0 %302
    %v305 = vadd.f32 %v290, %v303
    %v306 = vtanh.pop %v305
    %v307 = vsub.f32 0.0, %v306
    %309 = vrot.lane.b32.xlu0 %v307, 96
    %v310 = vpop.permute.xlu0 %309
    %v312 = vmul.f32 %v295, %v310
    %314 = vrot.lane.b32.xlu0 %v312, 32
    %v315 = vpop.permute.xlu0 %314
    %v317 = vadd.f32 %v306, %v315
    %v318 = vsel %vm212, %v265, 0
    %320 = vmatpush.msra.mxu0 0.0
    %321 = vmatpush.msra.mxu0 0.0
    %322 = vmatpush.msra.mxu0 0.0
    %323 = vmatpush.msra.mxu0 0.0
    %324 = vmatpush.msra.mxu0 0.0
    %325 = vmatpush.msra.mxu0 0.0
    %326 = vmatpush.msra.mxu0 0.0
    %327 = vmatpush.msra.mxu0 0.0
    %328 = vmatpush.msra.mxu0 0.0
    %329 = vmatpush.msra.mxu0 0.0
    %330 = vmatpush.msra.mxu0 0.0
    %331 = vmatpush.msra.mxu0 0.0
    %332 = vmatpush.msra.mxu0 %v195
    %333 = vmatpush.msra.mxu0 %v194
    %334 = vmatpush.msra.mxu0 %v193
    %335 = vmatpush.msra.mxu0 %v192
    %336 = vmatmul.f32.gmra.mxu0 %v318
    %v337 = vpop.f32.mrf.mxu0
    %v338 = vadd.f32 %v206, %v337
    %339 = vdwg.mxu0
    %v340 = vadd.f32 %v172, %v338
    %v341 = vmul.f32 %v340, 0.5
    %v342 = vtanh.pop %v341
    %v343 = vmul.f32 %v342, 0.5
    %v344 = vadd.f32 %v343, 0.5
    %346 = vrot.lane.b32.xlu0 %v338, 64
    %v347 = vpop.permute.xlu0 %346
    %v349 = vmul.f32 %v344, %v347
    %351 = vrot.lane.b32.xlu0 %v349, 64
    %v352 = vpop.permute.xlu0 %351
    %v354 = vadd.f32 %v172, %v352
    %v355 = vtanh.pop %v354
    %v356 = vsub.f32 %v262, %v355
    %358 = vrot.lane.b32.xlu0 %v356, 96
    %v359 = vpop.permute.xlu0 %358
    %v361 = vmul.f32 %v344, %v359
    %363 = vrot.lane.b32.xlu0 %v361, 32
    %v364 = vpop.permute.xlu0 %363
    %v366 = vadd.f32 %v355, %v364
    %368 = vrot.lane.b32.xlu0 %v366, 64
    %v369 = vpop.permute.xlu0 %368
    %372 = vrot.lane.b32.xlu0 %v317, 96
    %v373 = vpop.permute.xlu0 %372
    %v375 = vsel %vm212, %v369, %v373
    %v377 = vsel %vm268, %v375, 0
    %379 = vmatpush.msra.mxu0 0.0
    %380 = vmatpush.msra.mxu0 0.0
    %381 = vmatpush.msra.mxu0 0.0
    %382 = vmatpush.msra.mxu0 0.0
    %383 = vmatpush.msra.mxu0 0.0
    %384 = vmatpush.msra.mxu0 0.0
    %385 = vmatpush.msra.mxu0 0.0
    %386 = vmatpush.msra.mxu0 0.0
    %387 = vmatpush.msra.mxu0 %v203
    %388 = vmatpush.msra.mxu0 %v202
    %389 = vmatpush.msra.mxu0 %v201
    %390 = vmatpush.msra.mxu0 %v200
    %391 = vmatpush.msra.mxu0 %v199
    %392 = vmatpush.msra.mxu0 %v198
    %393 = vmatpush.msra.mxu0 %v197
    %394 = vmatpush.msra.mxu0 %v196
    %395 = vmatmul.f32.gmra.mxu0 %v377
    %v396 = vpop.f32.mrf.mxu0
    %v397 = vadd.f32 %v210, %v396
    %398 = vdwg.mxu0
    %v399 = vmul.f32 %v397, 0.5
    %v400 = vtanh.pop %v399
    %v401 = vmul.f32 %v400, 0.5
    %v402 = vadd.f32 %v401, 0.5
    %404 = vrot.lane.b32.xlu0 %v397, 32
    %v405 = vpop.permute.xlu0 %404
    %v407 = vmul.f32 %v402, %v405
    %409 = vrot.lane.b32.xlu0 %v407, 64
    %v410 = vpop.permute.xlu0 %409
    %v412 = vadd.f32 %v397, %v410
    %v413 = vtanh.pop %v412
    %v414 = vsub.f32 %v317, %v413
    %416 = vrot.lane.b32.xlu0 %v414, 96
    %v417 = vpop.permute.xlu0 %416
    %v419 = vmul.f32 %v402, %v417
    %421 = vrot.lane.b32.xlu0 %v419, 32
    %v422 = vpop.permute.xlu0 %421
    %v424 = vadd.f32 %v413, %v422
    %v425 = vsel %vm212, %v369, 0
    %427 = vmatpush.msra.mxu0 0.0
    %428 = vmatpush.msra.mxu0 0.0
    %429 = vmatpush.msra.mxu0 0.0
    %430 = vmatpush.msra.mxu0 0.0
    %431 = vmatpush.msra.mxu0 0.0
    %432 = vmatpush.msra.mxu0 0.0
    %433 = vmatpush.msra.mxu0 0.0
    %434 = vmatpush.msra.mxu0 0.0
    %435 = vmatpush.msra.mxu0 0.0
    %436 = vmatpush.msra.mxu0 0.0
    %437 = vmatpush.msra.mxu0 0.0
    %438 = vmatpush.msra.mxu0 0.0
    %439 = vmatpush.msra.mxu0 %v195
    %440 = vmatpush.msra.mxu0 %v194
    %441 = vmatpush.msra.mxu0 %v193
    %442 = vmatpush.msra.mxu0 %v192
    %443 = vmatmul.f32.gmra.mxu0 %v425
    %v444 = vpop.f32.mrf.mxu0
    %v445 = vadd.f32 %v206, %v444
    %446 = vdwg.mxu0
    %v447 = vadd.f32 %v175, %v445
    %v448 = vmul.f32 %v447, 0.5
    %v449 = vtanh.pop %v448
    %v450 = vmul.f32 %v449, 0.5
    %v451 = vadd.f32 %v450, 0.5
    %453 = vrot.lane.b32.xlu0 %v445, 64
    %v454 = vpop.permute.xlu0 %453
    %v456 = vmul.f32 %v451, %v454
    %458 = vrot.lane.b32.xlu0 %v456, 64
    %v459 = vpop.permute.xlu0 %458
    %v461 = vadd.f32 %v175, %v459
    %v462 = vtanh.pop %v461
    %v463 = vsub.f32 %v366, %v462
    %465 = vrot.lane.b32.xlu0 %v463, 96
    %v466 = vpop.permute.xlu0 %465
    %v468 = vmul.f32 %v451, %v466
    %470 = vrot.lane.b32.xlu0 %v468, 32
    %v471 = vpop.permute.xlu0 %470
    %v473 = vadd.f32 %v462, %v471
    %475 = vrot.lane.b32.xlu0 %v473, 64
    %v476 = vpop.permute.xlu0 %475
    %479 = vrot.lane.b32.xlu0 %v424, 96
    %v480 = vpop.permute.xlu0 %479
    %v482 = vsel %vm212, %v476, %v480
    %v484 = vsel %vm268, %v482, 0
    %486 = vmatpush.msra.mxu0 0.0
    %487 = vmatpush.msra.mxu0 0.0
    %488 = vmatpush.msra.mxu0 0.0
    %489 = vmatpush.msra.mxu0 0.0
    %490 = vmatpush.msra.mxu0 0.0
    %491 = vmatpush.msra.mxu0 0.0
    %492 = vmatpush.msra.mxu0 0.0
    %493 = vmatpush.msra.mxu0 0.0
    %494 = vmatpush.msra.mxu0 %v203
    %495 = vmatpush.msra.mxu0 %v202
    %496 = vmatpush.msra.mxu0 %v201
    %497 = vmatpush.msra.mxu0 %v200
    %498 = vmatpush.msra.mxu0 %v199
    %499 = vmatpush.msra.mxu0 %v198
    %500 = vmatpush.msra.mxu0 %v197
    %501 = vmatpush.msra.mxu0 %v196
    %502 = vmatmul.f32.gmra.mxu0 %v484
    %v503 = vpop.f32.mrf.mxu0
    %v504 = vadd.f32 %v210, %v503
    %505 = vdwg.mxu0
    %v506 = vmul.f32 %v504, 0.5
    %v507 = vtanh.pop %v506
    %v508 = vmul.f32 %v507, 0.5
    %v509 = vadd.f32 %v508, 0.5
    %511 = vrot.lane.b32.xlu0 %v504, 32
    %v512 = vpop.permute.xlu0 %511
    %v514 = vmul.f32 %v509, %v512
    %516 = vrot.lane.b32.xlu0 %v514, 64
    %v517 = vpop.permute.xlu0 %516
    %v519 = vadd.f32 %v504, %v517
    %v520 = vtanh.pop %v519
    %v521 = vsub.f32 %v424, %v520
    %523 = vrot.lane.b32.xlu0 %v521, 96
    %v524 = vpop.permute.xlu0 %523
    %v526 = vmul.f32 %v509, %v524
    %528 = vrot.lane.b32.xlu0 %v526, 32
    %v529 = vpop.permute.xlu0 %528
    %v531 = vadd.f32 %v520, %v529
    %v532 = vsel %vm212, %v476, 0
    %534 = vmatpush.msra.mxu0 0.0
    %535 = vmatpush.msra.mxu0 0.0
    %536 = vmatpush.msra.mxu0 0.0
    %537 = vmatpush.msra.mxu0 0.0
    %538 = vmatpush.msra.mxu0 0.0
    %539 = vmatpush.msra.mxu0 0.0
    %540 = vmatpush.msra.mxu0 0.0
    %541 = vmatpush.msra.mxu0 0.0
    %542 = vmatpush.msra.mxu0 0.0
    %543 = vmatpush.msra.mxu0 0.0
    %544 = vmatpush.msra.mxu0 0.0
    %545 = vmatpush.msra.mxu0 0.0
    %546 = vmatpush.msra.mxu0 %v195
    %547 = vmatpush.msra.mxu0 %v194
    %548 = vmatpush.msra.mxu0 %v193
    %549 = vmatpush.msra.mxu0 %v192
    %550 = vmatmul.f32.gmra.mxu0 %v532
    %v551 = vpop.f32.mrf.mxu0
    %v552 = vadd.f32 %v206, %v551
    %553 = vdwg.mxu0
    %v554 = vadd.f32 %v178, %v552
    %v555 = vmul.f32 %v554, 0.5
    %v556 = vtanh.pop %v555
    %v557 = vmul.f32 %v556, 0.5
    %v558 = vadd.f32 %v557, 0.5
    %560 = vrot.lane.b32.xlu0 %v552, 64
    %v561 = vpop.permute.xlu0 %560
    %v563 = vmul.f32 %v558, %v561
    %565 = vrot.lane.b32.xlu0 %v563, 64
    %v566 = vpop.permute.xlu0 %565
    %v568 = vadd.f32 %v178, %v566
    %v569 = vtanh.pop %v568
    %v570 = vsub.f32 %v473, %v569
    %572 = vrot.lane.b32.xlu0 %v570, 96
    %v573 = vpop.permute.xlu0 %572
    %v575 = vmul.f32 %v558, %v573
    %577 = vrot.lane.b32.xlu0 %v575, 32
    %v578 = vpop.permute.xlu0 %577
    %v580 = vadd.f32 %v569, %v578
    %582 = vrot.lane.b32.xlu0 %v580, 64
    %v583 = vpop.permute.xlu0 %582
    %586 = vrot.lane.b32.xlu0 %v531, 96
    %v587 = vpop.permute.xlu0 %586
    %v589 = vsel %vm212, %v583, %v587
    %v591 = vsel %vm268, %v589, 0
    %593 = vmatpush.msra.mxu0 0.0
    %594 = vmatpush.msra.mxu0 0.0
    %595 = vmatpush.msra.mxu0 0.0
    %596 = vmatpush.msra.mxu0 0.0
    %597 = vmatpush.msra.mxu0 0.0
    %598 = vmatpush.msra.mxu0 0.0
    %599 = vmatpush.msra.mxu0 0.0
    %600 = vmatpush.msra.mxu0 0.0
    %601 = vmatpush.msra.mxu0 %v203
    %602 = vmatpush.msra.mxu0 %v202
    %603 = vmatpush.msra.mxu0 %v201
    %604 = vmatpush.msra.mxu0 %v200
    %605 = vmatpush.msra.mxu0 %v199
    %606 = vmatpush.msra.mxu0 %v198
    %607 = vmatpush.msra.mxu0 %v197
    %608 = vmatpush.msra.mxu0 %v196
    %609 = vmatmul.f32.gmra.mxu0 %v591
    %v610 = vpop.f32.mrf.mxu0
    %v611 = vadd.f32 %v210, %v610
    %612 = vdwg.mxu0
    %v613 = vmul.f32 %v611, 0.5
    %v614 = vtanh.pop %v613
    %v615 = vmul.f32 %v614, 0.5
    %v616 = vadd.f32 %v615, 0.5
    %618 = vrot.lane.b32.xlu0 %v611, 32
    %v619 = vpop.permute.xlu0 %618
    %v621 = vmul.f32 %v616, %v619
    %623 = vrot.lane.b32.xlu0 %v621, 64
    %v624 = vpop.permute.xlu0 %623
    %v626 = vadd.f32 %v611, %v624
    %v627 = vtanh.pop %v626
    %v628 = vsub.f32 %v531, %v627
    %630 = vrot.lane.b32.xlu0 %v628, 96
    %v631 = vpop.permute.xlu0 %630
    %v633 = vmul.f32 %v616, %v631
    %635 = vrot.lane.b32.xlu0 %v633, 32
    %v636 = vpop.permute.xlu0 %635
    %v638 = vadd.f32 %v627, %v636
    %v639 = vsel %vm212, %v583, 0
    %641 = vmatpush.msra.mxu0 0.0
    %642 = vmatpush.msra.mxu0 0.0
    %643 = vmatpush.msra.mxu0 0.0
    %644 = vmatpush.msra.mxu0 0.0
    %645 = vmatpush.msra.mxu0 0.0
    %646 = vmatpush.msra.mxu0 0.0
    %647 = vmatpush.msra.mxu0 0.0
    %648 = vmatpush.msra.mxu0 0.0
    %649 = vmatpush.msra.mxu0 0.0
    %650 = vmatpush.msra.mxu0 0.0
    %651 = vmatpush.msra.mxu0 0.0
    %652 = vmatpush.msra.mxu0 0.0
    %653 = vmatpush.msra.mxu0 %v195
    %654 = vmatpush.msra.mxu0 %v194
    %655 = vmatpush.msra.mxu0 %v193
    %656 = vmatpush.msra.mxu0 %v192
    %657 = vmatmul.f32.gmra.mxu0 %v639
    %v658 = vpop.f32.mrf.mxu0
    %v659 = vadd.f32 %v206, %v658
    %660 = vdwg.mxu0
    %v661 = vadd.f32 %v181, %v659
    %v662 = vmul.f32 %v661, 0.5
    %v663 = vtanh.pop %v662
    %v664 = vmul.f32 %v663, 0.5
    %v665 = vadd.f32 %v664, 0.5
    %667 = vrot.lane.b32.xlu0 %v659, 64
    %v668 = vpop.permute.xlu0 %667
    %v670 = vmul.f32 %v665, %v668
    %672 = vrot.lane.b32.xlu0 %v670, 64
    %v673 = vpop.permute.xlu0 %672
    %v675 = vadd.f32 %v181, %v673
    %v676 = vtanh.pop %v675
    %v677 = vsub.f32 %v580, %v676
    %679 = vrot.lane.b32.xlu0 %v677, 96
    %v680 = vpop.permute.xlu0 %679
    %v682 = vmul.f32 %v665, %v680
    %684 = vrot.lane.b32.xlu0 %v682, 32
    %v685 = vpop.permute.xlu0 %684
    %v687 = vadd.f32 %v676, %v685
    %689 = vrot.lane.b32.xlu0 %v687, 64
    %v690 = vpop.permute.xlu0 %689
    %693 = vrot.lane.b32.xlu0 %v638, 96
    %v694 = vpop.permute.xlu0 %693
    %v696 = vsel %vm212, %v690, %v694
    %v698 = vsel %vm268, %v696, 0
    %700 = vmatpush.msra.mxu0 0.0
    %701 = vmatpush.msra.mxu0 0.0
    %702 = vmatpush.msra.mxu0 0.0
    %703 = vmatpush.msra.mxu0 0.0
    %704 = vmatpush.msra.mxu0 0.0
    %705 = vmatpush.msra.mxu0 0.0
    %706 = vmatpush.msra.mxu0 0.0
    %707 = vmatpush.msra.mxu0 0.0
    %708 = vmatpush.msra.mxu0 %v203
    %709 = vmatpush.msra.mxu0 %v202
    %710 = vmatpush.msra.mxu0 %v201
    %711 = vmatpush.msra.mxu0 %v200
    %712 = vmatpush.msra.mxu0 %v199
    %713 = vmatpush.msra.mxu0 %v198
    %714 = vmatpush.msra.mxu0 %v197
    %715 = vmatpush.msra.mxu0 %v196
    %716 = vmatmul.f32.gmra.mxu0 %v698
    %v717 = vpop.f32.mrf.mxu0
    %v718 = vadd.f32 %v210, %v717
    %719 = vdwg.mxu0
    %v720 = vmul.f32 %v718, 0.5
    %v721 = vtanh.pop %v720
    %v722 = vmul.f32 %v721, 0.5
    %v723 = vadd.f32 %v722, 0.5
    %725 = vrot.lane.b32.xlu0 %v718, 32
    %v726 = vpop.permute.xlu0 %725
    %v728 = vmul.f32 %v723, %v726
    %730 = vrot.lane.b32.xlu0 %v728, 64
    %v731 = vpop.permute.xlu0 %730
    %v733 = vadd.f32 %v718, %v731
    %v734 = vtanh.pop %v733
    %v735 = vsub.f32 %v638, %v734
    %737 = vrot.lane.b32.xlu0 %v735, 96
    %v738 = vpop.permute.xlu0 %737
    %v740 = vmul.f32 %v723, %v738
    %742 = vrot.lane.b32.xlu0 %v740, 32
    %v743 = vpop.permute.xlu0 %742
    %v745 = vadd.f32 %v734, %v743
    %v746 = vsel %vm212, %v690, 0
    %748 = vmatpush.msra.mxu0 0.0
    %749 = vmatpush.msra.mxu0 0.0
    %750 = vmatpush.msra.mxu0 0.0
    %751 = vmatpush.msra.mxu0 0.0
    %752 = vmatpush.msra.mxu0 0.0
    %753 = vmatpush.msra.mxu0 0.0
    %754 = vmatpush.msra.mxu0 0.0
    %755 = vmatpush.msra.mxu0 0.0
    %756 = vmatpush.msra.mxu0 0.0
    %757 = vmatpush.msra.mxu0 0.0
    %758 = vmatpush.msra.mxu0 0.0
    %759 = vmatpush.msra.mxu0 0.0
    %760 = vmatpush.msra.mxu0 %v195
    %761 = vmatpush.msra.mxu0 %v194
    %762 = vmatpush.msra.mxu0 %v193
    %763 = vmatpush.msra.mxu0 %v192
    %764 = vmatmul.f32.gmra.mxu0 %v746
    %v765 = vpop.f32.mrf.mxu0
    %v766 = vadd.f32 %v206, %v765
    %767 = vdwg.mxu0
    %v768 = vadd.f32 %v184, %v766
    %v769 = vmul.f32 %v768, 0.5
    %v770 = vtanh.pop %v769
    %v771 = vmul.f32 %v770, 0.5
    %v772 = vadd.f32 %v771, 0.5
    %774 = vrot.lane.b32.xlu0 %v766, 64
    %v775 = vpop.permute.xlu0 %774
    %v777 = vmul.f32 %v772, %v775
    %779 = vrot.lane.b32.xlu0 %v777, 64
    %v780 = vpop.permute.xlu0 %779
    %v782 = vadd.f32 %v184, %v780
    %v783 = vtanh.pop %v782
    %v784 = vsub.f32 %v687, %v783
    %786 = vrot.lane.b32.xlu0 %v784, 96
    %v787 = vpop.permute.xlu0 %786
    %v789 = vmul.f32 %v772, %v787
    %791 = vrot.lane.b32.xlu0 %v789, 32
    %v792 = vpop.permute.xlu0 %791
    %v794 = vadd.f32 %v783, %v792
    %796 = vrot.lane.b32.xlu0 %v794, 64
    %v797 = vpop.permute.xlu0 %796
    %800 = vrot.lane.b32.xlu0 %v745, 96
    %v801 = vpop.permute.xlu0 %800
    %v803 = vsel %vm212, %v797, %v801
    %v805 = vsel %vm268, %v803, 0
    %807 = vmatpush.msra.mxu0 0.0
    %808 = vmatpush.msra.mxu0 0.0
    %809 = vmatpush.msra.mxu0 0.0
    %810 = vmatpush.msra.mxu0 0.0
    %811 = vmatpush.msra.mxu0 0.0
    %812 = vmatpush.msra.mxu0 0.0
    %813 = vmatpush.msra.mxu0 0.0
    %814 = vmatpush.msra.mxu0 0.0
    %815 = vmatpush.msra.mxu0 %v203
    %816 = vmatpush.msra.mxu0 %v202
    %817 = vmatpush.msra.mxu0 %v201
    %818 = vmatpush.msra.mxu0 %v200
    %819 = vmatpush.msra.mxu0 %v199
    %820 = vmatpush.msra.mxu0 %v198
    %821 = vmatpush.msra.mxu0 %v197
    %822 = vmatpush.msra.mxu0 %v196
    %823 = vmatmul.f32.gmra.mxu0 %v805
    %v824 = vpop.f32.mrf.mxu0
    %v825 = vadd.f32 %v210, %v824
    %826 = vdwg.mxu0
    %v827 = vmul.f32 %v825, 0.5
    %v828 = vtanh.pop %v827
    %v829 = vmul.f32 %v828, 0.5
    %v830 = vadd.f32 %v829, 0.5
    %832 = vrot.lane.b32.xlu0 %v825, 32
    %v833 = vpop.permute.xlu0 %832
    %v835 = vmul.f32 %v830, %v833
    %837 = vrot.lane.b32.xlu0 %v835, 64
    %v838 = vpop.permute.xlu0 %837
    %v840 = vadd.f32 %v825, %v838
    %v841 = vtanh.pop %v840
    %v842 = vsub.f32 %v745, %v841
    %844 = vrot.lane.b32.xlu0 %v842, 96
    %v845 = vpop.permute.xlu0 %844
    %v847 = vmul.f32 %v830, %v845
    %849 = vrot.lane.b32.xlu0 %v847, 32
    %v850 = vpop.permute.xlu0 %849
    %v852 = vadd.f32 %v841, %v850
    %v853 = vsel %vm212, %v797, 0
    %855 = vmatpush.msra.mxu0 0.0
    %856 = vmatpush.msra.mxu0 0.0
    %857 = vmatpush.msra.mxu0 0.0
    %858 = vmatpush.msra.mxu0 0.0
    %859 = vmatpush.msra.mxu0 0.0
    %860 = vmatpush.msra.mxu0 0.0
    %861 = vmatpush.msra.mxu0 0.0
    %862 = vmatpush.msra.mxu0 0.0
    %863 = vmatpush.msra.mxu0 0.0
    %864 = vmatpush.msra.mxu0 0.0
    %865 = vmatpush.msra.mxu0 0.0
    %866 = vmatpush.msra.mxu0 0.0
    %867 = vmatpush.msra.mxu0 %v195
    %868 = vmatpush.msra.mxu0 %v194
    %869 = vmatpush.msra.mxu0 %v193
    %870 = vmatpush.msra.mxu0 %v192
    %871 = vmatmul.f32.gmra.mxu0 %v853
    %v872 = vpop.f32.mrf.mxu0
    %v873 = vadd.f32 %v206, %v872
    %874 = vdwg.mxu0
    %v875 = vadd.f32 %v187, %v873
    %v876 = vmul.f32 %v875, 0.5
    %v877 = vtanh.pop %v876
    %v878 = vmul.f32 %v877, 0.5
    %v879 = vadd.f32 %v878, 0.5
    %881 = vrot.lane.b32.xlu0 %v873, 64
    %v882 = vpop.permute.xlu0 %881
    %v884 = vmul.f32 %v879, %v882
    %886 = vrot.lane.b32.xlu0 %v884, 64
    %v887 = vpop.permute.xlu0 %886
    %v889 = vadd.f32 %v187, %v887
    %v890 = vtanh.pop %v889
    %v891 = vsub.f32 %v794, %v890
    %893 = vrot.lane.b32.xlu0 %v891, 96
    %v894 = vpop.permute.xlu0 %893
    %v896 = vmul.f32 %v879, %v894
    %898 = vrot.lane.b32.xlu0 %v896, 32
    %v899 = vpop.permute.xlu0 %898
    %v901 = vadd.f32 %v890, %v899
    %903 = vrot.lane.b32.xlu0 %v901, 64
    %v904 = vpop.permute.xlu0 %903
    %907 = vrot.lane.b32.xlu0 %v852, 96
    %v908 = vpop.permute.xlu0 %907
    %v910 = vsel %vm212, %v904, %v908
    %v912 = vsel %vm268, %v910, 0
    %914 = vmatpush.msra.mxu0 0.0
    %915 = vmatpush.msra.mxu0 0.0
    %916 = vmatpush.msra.mxu0 0.0
    %917 = vmatpush.msra.mxu0 0.0
    %918 = vmatpush.msra.mxu0 0.0
    %919 = vmatpush.msra.mxu0 0.0
    %920 = vmatpush.msra.mxu0 0.0
    %921 = vmatpush.msra.mxu0 0.0
    %922 = vmatpush.msra.mxu0 %v203
    %923 = vmatpush.msra.mxu0 %v202
    %924 = vmatpush.msra.mxu0 %v201
    %925 = vmatpush.msra.mxu0 %v200
    %926 = vmatpush.msra.mxu0 %v199
    %927 = vmatpush.msra.mxu0 %v198
    %928 = vmatpush.msra.mxu0 %v197
    %929 = vmatpush.msra.mxu0 %v196
    %930 = vmatmul.f32.gmra.mxu0 %v912
    %v931 = vpop.f32.mrf.mxu0
    %v932 = vadd.f32 %v210, %v931
    %933 = vdwg.mxu0
    %v934 = vmul.f32 %v932, 0.5
    %v935 = vtanh.pop %v934
    %v936 = vmul.f32 %v935, 0.5
    %v937 = vadd.f32 %v936, 0.5
    %939 = vrot.lane.b32.xlu0 %v932, 32
    %v940 = vpop.permute.xlu0 %939
    %v942 = vmul.f32 %v937, %v940
    %944 = vrot.lane.b32.xlu0 %v942, 64
    %v945 = vpop.permute.xlu0 %944
    %v947 = vadd.f32 %v932, %v945
    %v948 = vtanh.pop %v947
    %v949 = vsub.f32 %v852, %v948
    %951 = vrot.lane.b32.xlu0 %v949, 96
    %v952 = vpop.permute.xlu0 %951
    %v954 = vmul.f32 %v937, %v952
    %956 = vrot.lane.b32.xlu0 %v954, 32
    %v957 = vpop.permute.xlu0 %956
    %v959 = vadd.f32 %v948, %v957
    %v960 = vsel %vm212, %v904, 0
    %962 = vmatpush.msra.mxu0 0.0
    %963 = vmatpush.msra.mxu0 0.0
    %964 = vmatpush.msra.mxu0 0.0
    %965 = vmatpush.msra.mxu0 0.0
    %966 = vmatpush.msra.mxu0 0.0
    %967 = vmatpush.msra.mxu0 0.0
    %968 = vmatpush.msra.mxu0 0.0
    %969 = vmatpush.msra.mxu0 0.0
    %970 = vmatpush.msra.mxu0 0.0
    %971 = vmatpush.msra.mxu0 0.0
    %972 = vmatpush.msra.mxu0 0.0
    %973 = vmatpush.msra.mxu0 0.0
    %974 = vmatpush.msra.mxu0 %v195
    %975 = vmatpush.msra.mxu0 %v194
    %976 = vmatpush.msra.mxu0 %v193
    %977 = vmatpush.msra.mxu0 %v192
    %978 = vmatmul.f32.gmra.mxu0 %v960
    %v979 = vpop.f32.mrf.mxu0
    %v980 = vadd.f32 %v206, %v979
    %981 = vdwg.mxu0
    %v982 = vadd.f32 %v190, %v980
    %v983 = vmul.f32 %v982, 0.5
    %v984 = vtanh.pop %v983
    %v985 = vmul.f32 %v984, 0.5
    %v986 = vadd.f32 %v985, 0.5
    %988 = vrot.lane.b32.xlu0 %v980, 64
    %v989 = vpop.permute.xlu0 %988
    %v991 = vmul.f32 %v986, %v989
    %993 = vrot.lane.b32.xlu0 %v991, 64
    %v994 = vpop.permute.xlu0 %993
    %v996 = vadd.f32 %v190, %v994
    %v997 = vtanh.pop %v996
    %v998 = vsub.f32 %v901, %v997
    %1000 = vrot.lane.b32.xlu0 %v998, 96
    %v1001 = vpop.permute.xlu0 %1000
    %v1003 = vmul.f32 %v986, %v1001
    %1005 = vrot.lane.b32.xlu0 %v1003, 32
    %v1006 = vpop.permute.xlu0 %1005
    %v1008 = vadd.f32 %v997, %v1006
    %1010 = vrot.lane.b32.xlu0 %v1008, 64
    %v1011 = vpop.permute.xlu0 %1010
    %1014 = vrot.lane.b32.xlu0 %v959, 96
    %v1015 = vpop.permute.xlu0 %1014
    %v1017 = vsel %vm212, %v1011, %v1015
    %v1019 = vsel %vm268, %v1017, 0
    %1021 = vmatpush.msra.mxu0 0.0
    %1022 = vmatpush.msra.mxu0 0.0
    %1023 = vmatpush.msra.mxu0 0.0
    %1024 = vmatpush.msra.mxu0 0.0
    %1025 = vmatpush.msra.mxu0 0.0
    %1026 = vmatpush.msra.mxu0 0.0
    %1027 = vmatpush.msra.mxu0 0.0
    %1028 = vmatpush.msra.mxu0 0.0
    %1029 = vmatpush.msra.mxu0 %v203
    %1030 = vmatpush.msra.mxu0 %v202
    %1031 = vmatpush.msra.mxu0 %v201
    %1032 = vmatpush.msra.mxu0 %v200
    %1033 = vmatpush.msra.mxu0 %v199
    %1034 = vmatpush.msra.mxu0 %v198
    %1035 = vmatpush.msra.mxu0 %v197
    %1036 = vmatpush.msra.mxu0 %v196
    %1037 = vmatmul.f32.gmra.mxu0 %v1019
    %v1038 = vpop.f32.mrf.mxu0
    %v1039 = vadd.f32 %v210, %v1038
    %1040 = vdwg.mxu0
    %v1041 = vmul.f32 %v1039, 0.5
    %v1042 = vtanh.pop %v1041
    %v1043 = vmul.f32 %v1042, 0.5
    %v1044 = vadd.f32 %v1043, 0.5
    %1046 = vrot.lane.b32.xlu0 %v1039, 32
    %v1047 = vpop.permute.xlu0 %1046
    %v1049 = vmul.f32 %v1044, %v1047
    %1051 = vrot.lane.b32.xlu0 %v1049, 64
    %v1052 = vpop.permute.xlu0 %1051
    %v1054 = vadd.f32 %v1039, %v1052
    %v1055 = vtanh.pop %v1054
    %v1056 = vsub.f32 %v959, %v1055
    %1058 = vrot.lane.b32.xlu0 %v1056, 96
    %v1059 = vpop.permute.xlu0 %1058
    %v1061 = vmul.f32 %v1044, %v1059
    %1063 = vrot.lane.b32.xlu0 %v1061, 32
    %v1064 = vpop.permute.xlu0 %1063
    %v1066 = vadd.f32 %v1055, %v1064
    %v1067 = vmax.f32 %v1066, 0.0
    %v1068 = vld [vmem:[#allocation4] sm:$0xff]
    %v1069 = vld [vmem:[#allocation4 + $0x8] sm:$0xff]
    %v1070 = vld [vmem:[#allocation4 + $0x10] sm:$0xff]
    %v1071 = vld [vmem:[#allocation4 + $0x18] sm:$0xff]
    %v1072 = vld [vmem:[%s7] sm:$0x1]
    %v1074 = vperm.slane %v1072, 0
    %1077 = vrot.lane.b32.xlu0 %v1067, 64
    %v1078 = vpop.permute.xlu0 %1077
    %v1079 = vsel %vm212, %v1078, 0
    %1081 = vmatpush.msra.mxu0 0.0
    %1082 = vmatpush.msra.mxu0 0.0
    %1083 = vmatpush.msra.mxu0 0.0
    %1084 = vmatpush.msra.mxu0 0.0
    %1085 = vmatpush.msra.mxu0 0.0
    %1086 = vmatpush.msra.mxu0 0.0
    %1087 = vmatpush.msra.mxu0 0.0
    %1088 = vmatpush.msra.mxu0 0.0
    %1089 = vmatpush.msra.mxu0 0.0
    %1090 = vmatpush.msra.mxu0 0.0
    %1091 = vmatpush.msra.mxu0 0.0
    %1092 = vmatpush.msra.mxu0 0.0
    %1093 = vmatpush.msra.mxu0 %v1071
    %1094 = vmatpush.msra.mxu0 %v1070
    %1095 = vmatpush.msra.mxu0 %v1069
    %1096 = vmatpush.msra.mxu0 %v1068
    %1097 = vmatmul.f32.gmra.mxu0 %v1079
    %v1098 = vpop.f32.mrf.mxu0
    %v1099 = vadd.f32 %v1074, %v1098
    %1100 = vdwg.mxu0
    %1101 = vst [vmem:[%s8] sm:$0xff] %v1099
    // Predicated region
    $region42: #{progargnet_forward.1} parent=1 // pred_check
      _
    $region43: #{progargnet_forward.1} parent=1 // pred_check_branch
      %1103 = sbr.rel (0) target = $region45
    $region44: #{progargnet_forward.1} parent=1 // pred_region
      _
    $region45: #{progargnet_forward.1} parent=1 // pred_fallthru
      _
    // Predicated region
    $region46: #{progargnet_forward.1} parent=1 // pred_check
      _
    $region47: #{progargnet_forward.1} parent=1 // pred_check_branch
      %1105 = sbr.rel (0) target = $region49
    $region48: #{progargnet_forward.1} parent=1 // pred_region
      _
    $region49: #{progargnet_forward.1} parent=1 // pred_fallthru
      _
    %1106 = vsyncpa [#allocation3], 1
    %1107 = vsyncpa [#allocation5], 1

</llo_original>
